<compile_context>
chip_gen: v7x
topology: tpu7x:2x2x1
jax: 0.10.0
libtpu: 0.0.40
codegen_flags: <defaults>
</compile_context>

<pallas_src>
import math

import jax
import jax.numpy as jnp
from jax.experimental import pallas as pl
from jax.experimental.pallas import tpu as pltpu

IMAGE_DIM = 512
HIDDEN_DIM = 256
QUERY_NUM = 10
NUM_CLASSES = 2
POS_DIM = 16          # 8 + POS_DIM == 24, the declared local_encoder in_features
LOCAL_QUERY_DIM = 4
GLOBAL_QUERY_DIM = 12

# ---- weight-slab row offsets (16-aligned for clean bf16 (16,128) tiling) ----
# slab A: 128 lanes
_WI1_R = 0          # [512,128]
_WI2_R = 512        # [128, 32]
_WI3_R = 640        # [ 32,  8]
_WL1I_R = 672       # [  8,128]  image part of wl1
_WL1P_R = 688       # [ 16,128]  agent-pos part of wl1
_WDC1F_R = 704      # [256, 64]  fused [wd1|wc1] feature part
_WDC1Q_R = 960      # [  4, 64]  fused [wd1|wc1] query part
_WDC2_R = 976       # [ 64,  3]  block-diag fused [wd2|wc2]
_WE1F_R = 1040      # [256, 32]
_WE1Q_R = 1296      # [ 12, 32]
_WE2_R = 1312       # [ 32,  1]
_WA_ROWS, _WA_COLS = 1344, 128
# slab B: 256 lanes
_WL2_R = 0          # [128,256]
_WG1_R = 128        # [256,256]
_WG2_R = 384        # [256,256]
_WB_ROWS, _WB_COLS = 640, 256
# bias slab rows
_BI1, _BI2, _BI3, _BL1, _BL2, _BG1, _BG2, _BDC1, _BDC2, _BE1, _BE2 = range(11)


# ----------------------------- kernel ---------------------------------------


def zsla2_kernel(image_ref, pos_ref, lq_ref, gq_ref, wa_ref, wb_ref, b_ref, out_ref):
    f32, bf16 = jnp.float32, jnp.bfloat16
    B = image_ref.shape[0]
    BQ = lq_ref.shape[0]
    Q = BQ // B
    NC1 = out_ref.shape[1]                       # 1 + num_classes

    def mm(x, w):
        # bf16 x bf16 MXU matmul with f32 accumulation.
        return jnp.dot(x.astype(bf16), w, preferred_element_type=f32)

    def bias(row, n):
        return b_ref[row:row + 1, 0:n]           # [1, n] f32, broadcasts over rows

    # ---- image encoder: 512 -> 128 -> 32 -> 8 -------------------------------
    t = jnp.maximum(mm(image_ref[...], wa_ref[_WI1_R:_WI1_R + 512, :]) + bias(_BI1, 128), 0.0)
    t = jnp.maximum(mm(t, wa_ref[_WI2_R:_WI2_R + 128, 0:32]) + bias(_BI2, 32), 0.0)
    img_feat = mm(t, wa_ref[_WI3_R:_WI3_R + 32, 0:8]) + bias(_BI3, 8)          # [B, 8]

    # ---- local encoder: cat(img_feat, agent_pos) folded into split weights --
    t = jnp.maximum(mm(img_feat, wa_ref[_WL1I_R:_WL1I_R + 8, :])
                    + mm(pos_ref[...], wa_ref[_WL1P_R:_WL1P_R + POS_DIM, :])
                    + bias(_BL1, 128), 0.0)
    local_feat = mm(t, wb_ref[_WL2_R:_WL2_R + 128, :]) + bias(_BL2, 256)        # [B, 256]

    # ---- fused local distance + class decoders -------------------------------
    # one 256->64 matmul for the shared feature projection of BOTH heads
    feat_dc = mm(local_feat, wa_ref[_WDC1F_R:_WDC1F_R + 256, 0:64])             # [B, 64] f32

    # VPU broadcast of the per-batch fused feature to the B*Q query rows
    # (replaces the one-hot MXU matmul; stays in f32, no extra rounding).
    row_id = jax.lax.broadcasted_iota(jnp.int32, (BQ, 64), 0)
    feat_rows = jnp.broadcast_to(feat_dc[0:1, :], (BQ, 64))
    for b in range(1, B):                         # B is small & static -> unrolled selects
        feat_rows = jnp.where(row_id >= b * Q,
                              jnp.broadcast_to(feat_dc[b:b + 1, :], (BQ, 64)),
                              feat_rows)

    h = jnp.maximum(mm(lq_ref[...], wa_ref[_WDC1Q_R:_WDC1Q_R + 4, 0:64])
                    + feat_rows + bias(_BDC1, 64), 0.0)                         # [BQ, 64]
    dc = mm(h, wa_ref[_WDC2_R:_WDC2_R + 64, 0:NC1]) + bias(_BDC2, NC1)          # [BQ, 1+NC]
    # trailing ReLU applies only to the distance column (col 0), not the classes
    col = jax.lax.broadcasted_iota(jnp.int32, (BQ, NC1), 1)
    dc = jnp.where(col == 0, jnp.maximum(dc, 0.0), dc)

    # ---- global encoder + decoder --------------------------------------------
    g = jnp.maximum(mm(local_feat, wb_ref[_WG1_R:_WG1_R + 256, :]) + bias(_BG1, 256), 0.0)
    g = mm(g, wb_ref[_WG2_R:_WG2_R + 256, :]) + bias(_BG2, 256)                 # [B, 256]
    hg = jnp.maximum(mm(g, wa_ref[_WE1F_R:_WE1F_R + 256, 0:32])
                     + mm(gq_ref[...], wa_ref[_WE1Q_R:_WE1Q_R + GLOBAL_QUERY_DIM, 0:32])
                     + bias(_BE1, 32), 0.0)
    expr = jax.nn.sigmoid(mm(hg, wa_ref[_WE2_R:_WE2_R + 32, 0:1]) + bias(_BE2, 1))   # [B, 1]

    # ---- single merged store: rows [0:BQ] = (dist | class), rows [BQ:BQ+B] = exprate
    out_ref[0:BQ, :] = dc
    out_ref[BQ:BQ + B, :] = jnp.broadcast_to(expr, (B, NC1))


# ----------------------------- host-side packing ------------------------------


def pack_params(p):
    """Pack all parameters into 2 bf16 weight slabs + 1 f32 bias slab (done once)."""
    H = HIDDEN_DIM
    NC = p["wc2"].shape[1]

    def put(slab, row, w):
        r, c = w.shape
        return slab.at[row:row + r, 0:c].set(w.astype(jnp.bfloat16))

    wa = jnp.zeros((_WA_ROWS, _WA_COLS), jnp.bfloat16)
    wa = put(wa, _WI1_R, p["wi1"])
    wa = put(wa, _WI2_R, p["wi2"])
    wa = put(wa, _WI3_R, p["wi3"])
    wa = put(wa, _WL1I_R, p["wl1"][:8])
    wa = put(wa, _WL1P_R, p["wl1"][8:])
    wdc1 = jnp.concatenate([p["wd1"], p["wc1"]], axis=1)        # [(H+4), 64]
    wa = put(wa, _WDC1F_R, wdc1[:H])
    wa = put(wa, _WDC1Q_R, wdc1[H:])
    wdc2 = jnp.zeros((64, 1 + NC), jnp.float32)                 # block-diagonal head
    wdc2 = wdc2.at[0:32, 0:1].set(p["wd2"])
    wdc2 = wdc2.at[32:64, 1:1 + NC].set(p["wc2"])
    wa = put(wa, _WDC2_R, wdc2)
    wa = put(wa, _WE1F_R, p["we1"][:H])
    wa = put(wa, _WE1Q_R, p["we1"][H:])
    wa = put(wa, _WE2_R, p["we2"])

    wb = jnp.zeros((_WB_ROWS, _WB_COLS), jnp.bfloat16)
    wb = put(wb, _WL2_R, p["wl2"])
    wb = put(wb, _WG1_R, p["wg1"])
    wb = put(wb, _WG2_R, p["wg2"])

    bias = jnp.zeros((11, 256), jnp.float32)

    def putb(slab, row, b):
        b = b.reshape(-1)
        return slab.at[row, 0:b.shape[0]].set(b)

    bias = putb(bias, _BI1, p["bi1"])
    bias = putb(bias, _BI2, p["bi2"])
    bias = putb(bias, _BI3, p["bi3"])
    bias = putb(bias, _BL1, p["bl1"])
    bias = putb(bias, _BL2, p["bl2"])
    bias = putb(bias, _BG1, p["bg1"])
    bias = putb(bias, _BG2, p["bg2"])
    bias = putb(bias, _BDC1, jnp.concatenate([p["bd1"].reshape(-1), p["bc1"].reshape(-1)]))
    bias = putb(bias, _BDC2, jnp.concatenate([p["bd2"].reshape(-1), p["bc2"].reshape(-1)]))
    bias = putb(bias, _BE1, p["be1"])
    bias = putb(bias, _BE2, p["be2"])
    return wa, wb, bias


# ----------------------------- wrapper ---------------------------------------


def zsla2_forward(image, agent_pos, local_query, global_query, packed,
                  num_classes=NUM_CLASSES):
    """Returns (local_distance [B,Q,1], local_class [B,Q,NC], global_exprate [B,1])."""
    B, Q, _ = local_query.shape
    NC = num_classes
    lq_flat = local_query.reshape(B * Q, LOCAL_QUERY_DIM)
    wa, wb, bias = packed

    vmem = pl.BlockSpec(memory_space=pltpu.MemorySpace.VMEM)
    out = pl.pallas_call(
        zsla2_kernel,
        out_shape=jax.ShapeDtypeStruct((B * Q + B, 1 + NC), jnp.float32),
        in_specs=[vmem] * 7,
        out_specs=vmem,
    )(image, agent_pos, lq_flat, global_query, wa, wb, bias)

    dist = out[:B * Q, 0:1].reshape(B, Q, 1)
    cls = out[:B * Q, 1:1 + NC].reshape(B, Q, NC)
    expr = out[B * Q:, 0:1]
    return dist, cls, expr


# --------------------------- parameter init ----------------------------------


def init_params(key):
    """PyTorch-style Linear init; weights stored as [in, out], rounded to bf16
    so the kernel (bf16) and reference (f32) use numerically identical weights."""
    H = HIDDEN_DIM
    keys = iter(jax.random.split(key, 32))

    def linear(fan_in, fan_out):
        s = 1.0 / math.sqrt(fan_in)
        w = jax.random.uniform(next(keys), (fan_in, fan_out), jnp.float32, -s, s)
        b = jax.random.uniform(next(keys), (1, fan_out), jnp.float32, -s, s)
        w = w.astype(jnp.bfloat16).astype(jnp.float32)
        return w, b

    p = {}
    p["wi1"], p["bi1"] = linear(IMAGE_DIM, 128)
    p["wi2"], p["bi2"] = linear(128, 32)
    p["wi3"], p["bi3"] = linear(32, 8)
    p["wl1"], p["bl1"] = linear(8 + POS_DIM, 128)
    p["wl2"], p["bl2"] = linear(128, H)
    p["wg1"], p["bg1"] = linear(H, H)
    p["wg2"], p["bg2"] = linear(H, H)
    p["wd1"], p["bd1"] = linear(H + LOCAL_QUERY_DIM, 32)
    p["wd2"], p["bd2"] = linear(32, 1)
    p["wc1"], p["bc1"] = linear(H + LOCAL_QUERY_DIM, 32)
    p["wc2"], p["bc2"] = linear(32, NUM_CLASSES)
    p["we1"], p["be1"] = linear(H + GLOBAL_QUERY_DIM, 32)
    p["we2"], p["be2"] = linear(32, 1)
    return p


# --------------------------- pure-JAX reference -------------------------------


def reference(image, agent_pos, local_query, global_query, p):
    relu = lambda v: jnp.maximum(v, 0.0)
    f = relu(image @ p["wi1"] + p["bi1"])
    f = relu(f @ p["wi2"] + p["bi2"])
    img_feat = f @ p["wi3"] + p["bi3"]

    x = jnp.concatenate([img_feat, agent_pos], axis=1)
    lf = relu(x @ p["wl1"] + p["bl1"]) @ p["wl2"] + p["bl2"]

    B, Q, _ = local_query.shape
    tmp = jnp.broadcast_to(lf[:, None, :], (B, Q, lf.shape[1]))
    inp = jnp.concatenate([tmp, local_query], axis=2)
    dist = relu(relu(inp @ p["wd1"] + p["bd1"]) @ p["wd2"] + p["bd2"])
    cls = relu(inp @ p["wc1"] + p["bc1"]) @ p["wc2"] + p["bc2"]

    g = relu(lf @ p["wg1"] + p["bg1"]) @ p["wg2"] + p["bg2"]
    gi = jnp.concatenate([g, global_query], axis=1)
    expr = jax.nn.sigmoid(relu(gi @ p["we1"] + p["be1"]) @ p["we2"] + p["be2"])
    return dist, cls, expr


# ------------------------------- main ----------------------------------------

if __name__ == "__main__":
    key = jax.random.PRNGKey(0)
    k1, k2, k3, k4, kp = jax.random.split(key, 5)

    B = 2
    image = jax.random.normal(k1, (B, IMAGE_DIM), jnp.float32)
    agent_pos = jax.random.normal(k2, (B, POS_DIM), jnp.float32)
    local_query = jax.random.normal(k3, (B, QUERY_NUM, LOCAL_QUERY_DIM), jnp.float32)
    global_query = jax.random.normal(k4, (B, GLOBAL_QUERY_DIM), jnp.float32)
    params = init_params(kp)
    packed = pack_params(params)   # pack once; reuse across every forward call

    dist, cls, expr = zsla2_forward(image, agent_pos, local_query, global_query, packed)
    jax.block_until_ready((dist, cls, expr))

    rd, rc, re = reference(image, agent_pos, local_query, global_query, params)
    assert dist.shape == (B, QUERY_NUM, 1)
    assert cls.shape == (B, QUERY_NUM, NUM_CLASSES)
    assert expr.shape == (B, 1)
    assert jnp.allclose(dist, rd, rtol=2e-2, atol=2e-2)
    assert jnp.allclose(cls, rc, rtol=2e-2, atol=2e-2)
    assert jnp.allclose(expr, re, rtol=2e-2, atol=2e-2)

    print("KERNEL_OK")
</pallas_src>

<mosaic_0001>
module attributes {stable_mosaic.version = 11 : i64} {
  func.func @zsla2_kernel(%arg0: memref<2x512xf32, #tpu.memory_space<vmem>>, %arg1: memref<2x16xf32, #tpu.memory_space<vmem>>, %arg2: memref<20x4xf32, #tpu.memory_space<vmem>>, %arg3: memref<2x12xf32, #tpu.memory_space<vmem>>, %arg4: memref<1344x128xbf16, #tpu.memory_space<vmem>>, %arg5: memref<640x256xbf16, #tpu.memory_space<vmem>>, %arg6: memref<11x256xf32, #tpu.memory_space<vmem>>, %arg7: memref<22x3xf32, #tpu.memory_space<vmem>>) attributes {dimension_semantics = [], scalar_prefetch = 0 : i64, scratch_operands = 0 : i64, tpu.core_type = #tpu.core_type<tc>} {
    %c0 = arith.constant 0 : index
    %c0_0 = arith.constant 0 : index
    %0 = vector.load %arg0[%c0, %c0_0] : memref<2x512xf32, #tpu.memory_space<vmem>>, vector<2x512xf32>
    %c0_1 = arith.constant 0 : index
    %c0_2 = arith.constant 0 : index
    %1 = vector.load %arg4[%c0_1, %c0_2] : memref<1344x128xbf16, #tpu.memory_space<vmem>>, vector<512x128xbf16>
    %2 = arith.truncf %0 : vector<2x512xf32> to vector<2x512xbf16>
    %cst = arith.constant dense<0.000000e+00> : vector<2x128xf32>
    %3 = tpu.matmul %2, %1, %cst {dimension_numbers = #tpu.dot_dimension_numbers<[1], [0], [0], [1], [0, 0, 1, 1], [], []>} : vector<2x512xbf16>, vector<512x128xbf16>, vector<2x128xf32> -> vector<2x128xf32>
    %c0_3 = arith.constant 0 : index
    %c0_4 = arith.constant 0 : index
    %4 = vector.load %arg6[%c0_3, %c0_4] : memref<11x256xf32, #tpu.memory_space<vmem>>, vector<1x128xf32>
    %5 = vector.broadcast %4 : vector<1x128xf32> to vector<2x128xf32>
    %6 = arith.addf %3, %5 : vector<2x128xf32>
    %cst_5 = arith.constant 0.000000e+00 : f32
    %7 = vector.broadcast %cst_5 : f32 to vector<2x128xf32>
    %8 = arith.maximumf %6, %7 : vector<2x128xf32>
    %c512 = arith.constant 512 : index
    %c0_6 = arith.constant 0 : index
    %9 = vector.load %arg4[%c512, %c0_6] : memref<1344x128xbf16, #tpu.memory_space<vmem>>, vector<128x32xbf16>
    %10 = arith.truncf %8 : vector<2x128xf32> to vector<2x128xbf16>
    %cst_7 = arith.constant dense<0.000000e+00> : vector<2x32xf32>
    %11 = tpu.matmul %10, %9, %cst_7 {dimension_numbers = #tpu.dot_dimension_numbers<[1], [0], [0], [1], [0, 0, 1, 1], [], []>} : vector<2x128xbf16>, vector<128x32xbf16>, vector<2x32xf32> -> vector<2x32xf32>
    %c1 = arith.constant 1 : index
    %c0_8 = arith.constant 0 : index
    %12 = vector.load %arg6[%c1, %c0_8] : memref<11x256xf32, #tpu.memory_space<vmem>>, vector<1x32xf32>
    %13 = vector.broadcast %12 : vector<1x32xf32> to vector<2x32xf32>
    %14 = arith.addf %11, %13 : vector<2x32xf32>
    %cst_9 = arith.constant 0.000000e+00 : f32
    %15 = vector.broadcast %cst_9 : f32 to vector<2x32xf32>
    %16 = arith.maximumf %14, %15 : vector<2x32xf32>
    %c640 = arith.constant 640 : index
    %c0_10 = arith.constant 0 : index
    %17 = vector.load %arg4[%c640, %c0_10] : memref<1344x128xbf16, #tpu.memory_space<vmem>>, vector<32x8xbf16>
    %18 = arith.truncf %16 : vector<2x32xf32> to vector<2x32xbf16>
    %cst_11 = arith.constant dense<0.000000e+00> : vector<2x8xf32>
    %19 = tpu.matmul %18, %17, %cst_11 {dimension_numbers = #tpu.dot_dimension_numbers<[1], [0], [0], [1], [0, 0, 1, 1], [], []>} : vector<2x32xbf16>, vector<32x8xbf16>, vector<2x8xf32> -> vector<2x8xf32>
    %c2 = arith.constant 2 : index
    %c0_12 = arith.constant 0 : index
    %20 = vector.load %arg6[%c2, %c0_12] : memref<11x256xf32, #tpu.memory_space<vmem>>, vector<1x8xf32>
    %21 = vector.broadcast %20 : vector<1x8xf32> to vector<2x8xf32>
    %22 = arith.addf %19, %21 : vector<2x8xf32>
    %c672 = arith.constant 672 : index
    %c0_13 = arith.constant 0 : index
    %23 = vector.load %arg4[%c672, %c0_13] : memref<1344x128xbf16, #tpu.memory_space<vmem>>, vector<8x128xbf16>
    %24 = arith.truncf %22 : vector<2x8xf32> to vector<2x8xbf16>
    %cst_14 = arith.constant dense<0.000000e+00> : vector<2x128xf32>
    %25 = tpu.matmul %24, %23, %cst_14 {dimension_numbers = #tpu.dot_dimension_numbers<[1], [0], [0], [1], [0, 0, 1, 1], [], []>} : vector<2x8xbf16>, vector<8x128xbf16>, vector<2x128xf32> -> vector<2x128xf32>
    %c0_15 = arith.constant 0 : index
    %c0_16 = arith.constant 0 : index
    %26 = vector.load %arg1[%c0_15, %c0_16] : memref<2x16xf32, #tpu.memory_space<vmem>>, vector<2x16xf32>
    %c688 = arith.constant 688 : index
    %c0_17 = arith.constant 0 : index
    %27 = vector.load %arg4[%c688, %c0_17] : memref<1344x128xbf16, #tpu.memory_space<vmem>>, vector<16x128xbf16>
    %28 = arith.truncf %26 : vector<2x16xf32> to vector<2x16xbf16>
    %cst_18 = arith.constant dense<0.000000e+00> : vector<2x128xf32>
    %29 = tpu.matmul %28, %27, %cst_18 {dimension_numbers = #tpu.dot_dimension_numbers<[1], [0], [0], [1], [0, 0, 1, 1], [], []>} : vector<2x16xbf16>, vector<16x128xbf16>, vector<2x128xf32> -> vector<2x128xf32>
    %30 = arith.addf %25, %29 : vector<2x128xf32>
    %c3 = arith.constant 3 : index
    %c0_19 = arith.constant 0 : index
    %31 = vector.load %arg6[%c3, %c0_19] : memref<11x256xf32, #tpu.memory_space<vmem>>, vector<1x128xf32>
    %32 = vector.broadcast %31 : vector<1x128xf32> to vector<2x128xf32>
    %33 = arith.addf %30, %32 : vector<2x128xf32>
    %cst_20 = arith.constant 0.000000e+00 : f32
    %34 = vector.broadcast %cst_20 : f32 to vector<2x128xf32>
    %35 = arith.maximumf %33, %34 : vector<2x128xf32>
    %c0_21 = arith.constant 0 : index
    %c0_22 = arith.constant 0 : index
    %36 = vector.load %arg5[%c0_21, %c0_22] : memref<640x256xbf16, #tpu.memory_space<vmem>>, vector<128x256xbf16>
    %37 = arith.truncf %35 : vector<2x128xf32> to vector<2x128xbf16>
    %cst_23 = arith.constant dense<0.000000e+00> : vector<2x256xf32>
    %38 = tpu.matmul %37, %36, %cst_23 {dimension_numbers = #tpu.dot_dimension_numbers<[1], [0], [0], [1], [0, 0, 1, 1], [], []>} : vector<2x128xbf16>, vector<128x256xbf16>, vector<2x256xf32> -> vector<2x256xf32>
    %c4 = arith.constant 4 : index
    %c0_24 = arith.constant 0 : index
    %39 = vector.load %arg6[%c4, %c0_24] : memref<11x256xf32, #tpu.memory_space<vmem>>, vector<1x256xf32>
    %40 = vector.broadcast %39 : vector<1x256xf32> to vector<2x256xf32>
    %41 = arith.addf %38, %40 : vector<2x256xf32>
    %c704 = arith.constant 704 : index
    %c0_25 = arith.constant 0 : index
    %42 = vector.load %arg4[%c704, %c0_25] : memref<1344x128xbf16, #tpu.memory_space<vmem>>, vector<256x64xbf16>
    %43 = arith.truncf %41 : vector<2x256xf32> to vector<2x256xbf16>
    %cst_26 = arith.constant dense<0.000000e+00> : vector<2x64xf32>
    %44 = tpu.matmul %43, %42, %cst_26 {dimension_numbers = #tpu.dot_dimension_numbers<[1], [0], [0], [1], [0, 0, 1, 1], [], []>} : vector<2x256xbf16>, vector<256x64xbf16>, vector<2x64xf32> -> vector<2x64xf32>
    %45 = tpu.iota {dimensions = array<i32: 0>} : vector<20x64xi32>
    %46 = vector.extract_strided_slice %44 {offsets = [0, 0], sizes = [1, 64], strides = [1, 1]} : vector<2x64xf32> to vector<1x64xf32>
    %47 = vector.shape_cast %46 : vector<1x64xf32> to vector<1x64xf32>
    %48 = vector.broadcast %47 : vector<1x64xf32> to vector<20x64xf32>
    %c10_i32 = arith.constant 10 : i32
    %49 = vector.broadcast %c10_i32 : i32 to vector<20x64xi32>
    %50 = arith.cmpi sge, %45, %49 : vector<20x64xi32>
    %51 = vector.extract_strided_slice %44 {offsets = [1, 0], sizes = [1, 64], strides = [1, 1]} : vector<2x64xf32> to vector<1x64xf32>
    %52 = vector.shape_cast %51 : vector<1x64xf32> to vector<1x64xf32>
    %53 = vector.broadcast %52 : vector<1x64xf32> to vector<20x64xf32>
    %54 = arith.select %50, %53, %48 : vector<20x64xi1>, vector<20x64xf32>
    %c0_27 = arith.constant 0 : index
    %c0_28 = arith.constant 0 : index
    %55 = vector.load %arg2[%c0_27, %c0_28] : memref<20x4xf32, #tpu.memory_space<vmem>>, vector<20x4xf32>
    %c960 = arith.constant 960 : index
    %c0_29 = arith.constant 0 : index
    %56 = vector.load %arg4[%c960, %c0_29] : memref<1344x128xbf16, #tpu.memory_space<vmem>>, vector<4x64xbf16>
    %57 = arith.truncf %55 : vector<20x4xf32> to vector<20x4xbf16>
    %cst_30 = arith.constant dense<0.000000e+00> : vector<20x64xf32>
    %58 = tpu.matmul %57, %56, %cst_30 {dimension_numbers = #tpu.dot_dimension_numbers<[1], [0], [0], [1], [0, 0, 1, 1], [], []>} : vector<20x4xbf16>, vector<4x64xbf16>, vector<20x64xf32> -> vector<20x64xf32>
    %59 = arith.addf %58, %54 : vector<20x64xf32>
    %c7 = arith.constant 7 : index
    %c0_31 = arith.constant 0 : index
    %60 = vector.load %arg6[%c7, %c0_31] : memref<11x256xf32, #tpu.memory_space<vmem>>, vector<1x64xf32>
    %61 = vector.broadcast %60 : vector<1x64xf32> to vector<20x64xf32>
    %62 = arith.addf %59, %61 : vector<20x64xf32>
    %cst_32 = arith.constant 0.000000e+00 : f32
    %63 = vector.broadcast %cst_32 : f32 to vector<20x64xf32>
    %64 = arith.maximumf %62, %63 : vector<20x64xf32>
    %c976 = arith.constant 976 : index
    %c0_33 = arith.constant 0 : index
    %65 = vector.load %arg4[%c976, %c0_33] : memref<1344x128xbf16, #tpu.memory_space<vmem>>, vector<64x3xbf16>
    %66 = arith.truncf %64 : vector<20x64xf32> to vector<20x64xbf16>
    %cst_34 = arith.constant dense<0.000000e+00> : vector<20x3xf32>
    %67 = tpu.matmul %66, %65, %cst_34 {dimension_numbers = #tpu.dot_dimension_numbers<[1], [0], [0], [1], [0, 0, 1, 1], [], []>} : vector<20x64xbf16>, vector<64x3xbf16>, vector<20x3xf32> -> vector<20x3xf32>
    %c8 = arith.constant 8 : index
    %c0_35 = arith.constant 0 : index
    %68 = vector.load %arg6[%c8, %c0_35] : memref<11x256xf32, #tpu.memory_space<vmem>>, vector<1x3xf32>
    %69 = vector.broadcast %68 : vector<1x3xf32> to vector<20x3xf32>
    %70 = arith.addf %67, %69 : vector<20x3xf32>
    %71 = tpu.iota {dimensions = array<i32: 1>} : vector<20x3xi32>
    %c0_i32 = arith.constant 0 : i32
    %72 = vector.broadcast %c0_i32 : i32 to vector<20x3xi32>
    %73 = arith.cmpi eq, %71, %72 : vector<20x3xi32>
    %cst_36 = arith.constant 0.000000e+00 : f32
    %74 = vector.broadcast %cst_36 : f32 to vector<20x3xf32>
    %75 = arith.maximumf %70, %74 : vector<20x3xf32>
    %76 = arith.select %73, %75, %70 : vector<20x3xi1>, vector<20x3xf32>
    %c128 = arith.constant 128 : index
    %c0_37 = arith.constant 0 : index
    %77 = vector.load %arg5[%c128, %c0_37] : memref<640x256xbf16, #tpu.memory_space<vmem>>, vector<256x256xbf16>
    %78 = arith.truncf %41 : vector<2x256xf32> to vector<2x256xbf16>
    %cst_38 = arith.constant dense<0.000000e+00> : vector<2x256xf32>
    %79 = tpu.matmul %78, %77, %cst_38 {dimension_numbers = #tpu.dot_dimension_numbers<[1], [0], [0], [1], [0, 0, 1, 1], [], []>} : vector<2x256xbf16>, vector<256x256xbf16>, vector<2x256xf32> -> vector<2x256xf32>
    %c5 = arith.constant 5 : index
    %c0_39 = arith.constant 0 : index
    %80 = vector.load %arg6[%c5, %c0_39] : memref<11x256xf32, #tpu.memory_space<vmem>>, vector<1x256xf32>
    %81 = vector.broadcast %80 : vector<1x256xf32> to vector<2x256xf32>
    %82 = arith.addf %79, %81 : vector<2x256xf32>
    %cst_40 = arith.constant 0.000000e+00 : f32
    %83 = vector.broadcast %cst_40 : f32 to vector<2x256xf32>
    %84 = arith.maximumf %82, %83 : vector<2x256xf32>
    %c384 = arith.constant 384 : index
    %c0_41 = arith.constant 0 : index
    %85 = vector.load %arg5[%c384, %c0_41] : memref<640x256xbf16, #tpu.memory_space<vmem>>, vector<256x256xbf16>
    %86 = arith.truncf %84 : vector<2x256xf32> to vector<2x256xbf16>
    %cst_42 = arith.constant dense<0.000000e+00> : vector<2x256xf32>
    %87 = tpu.matmul %86, %85, %cst_42 {dimension_numbers = #tpu.dot_dimension_numbers<[1], [0], [0], [1], [0, 0, 1, 1], [], []>} : vector<2x256xbf16>, vector<256x256xbf16>, vector<2x256xf32> -> vector<2x256xf32>
    %c6 = arith.constant 6 : index
    %c0_43 = arith.constant 0 : index
    %88 = vector.load %arg6[%c6, %c0_43] : memref<11x256xf32, #tpu.memory_space<vmem>>, vector<1x256xf32>
    %89 = vector.broadcast %88 : vector<1x256xf32> to vector<2x256xf32>
    %90 = arith.addf %87, %89 : vector<2x256xf32>
    %c1040 = arith.constant 1040 : index
    %c0_44 = arith.constant 0 : index
    %91 = vector.load %arg4[%c1040, %c0_44] : memref<1344x128xbf16, #tpu.memory_space<vmem>>, vector<256x32xbf16>
    %92 = arith.truncf %90 : vector<2x256xf32> to vector<2x256xbf16>
    %cst_45 = arith.constant dense<0.000000e+00> : vector<2x32xf32>
    %93 = tpu.matmul %92, %91, %cst_45 {dimension_numbers = #tpu.dot_dimension_numbers<[1], [0], [0], [1], [0, 0, 1, 1], [], []>} : vector<2x256xbf16>, vector<256x32xbf16>, vector<2x32xf32> -> vector<2x32xf32>
    %c0_46 = arith.constant 0 : index
    %c0_47 = arith.constant 0 : index
    %94 = vector.load %arg3[%c0_46, %c0_47] : memref<2x12xf32, #tpu.memory_space<vmem>>, vector<2x12xf32>
    %c1296 = arith.constant 1296 : index
    %c0_48 = arith.constant 0 : index
    %95 = vector.load %arg4[%c1296, %c0_48] : memref<1344x128xbf16, #tpu.memory_space<vmem>>, vector<12x32xbf16>
    %96 = arith.truncf %94 : vector<2x12xf32> to vector<2x12xbf16>
    %cst_49 = arith.constant dense<0.000000e+00> : vector<2x32xf32>
    %97 = tpu.matmul %96, %95, %cst_49 {dimension_numbers = #tpu.dot_dimension_numbers<[1], [0], [0], [1], [0, 0, 1, 1], [], []>} : vector<2x12xbf16>, vector<12x32xbf16>, vector<2x32xf32> -> vector<2x32xf32>
    %98 = arith.addf %93, %97 : vector<2x32xf32>
    %c9 = arith.constant 9 : index
    %c0_50 = arith.constant 0 : index
    %99 = vector.load %arg6[%c9, %c0_50] : memref<11x256xf32, #tpu.memory_space<vmem>>, vector<1x32xf32>
    %100 = vector.broadcast %99 : vector<1x32xf32> to vector<2x32xf32>
    %101 = arith.addf %98, %100 : vector<2x32xf32>
    %cst_51 = arith.constant 0.000000e+00 : f32
    %102 = vector.broadcast %cst_51 : f32 to vector<2x32xf32>
    %103 = arith.maximumf %101, %102 : vector<2x32xf32>
    %c1312 = arith.constant 1312 : index
    %c0_52 = arith.constant 0 : index
    %104 = vector.load %arg4[%c1312, %c0_52] : memref<1344x128xbf16, #tpu.memory_space<vmem>>, vector<32x1xbf16>
    %105 = arith.truncf %103 : vector<2x32xf32> to vector<2x32xbf16>
    %cst_53 = arith.constant dense<0.000000e+00> : vector<2x1xf32>
    %106 = tpu.matmul %105, %104, %cst_53 {dimension_numbers = #tpu.dot_dimension_numbers<[1], [0], [0], [1], [0, 0, 1, 1], [], []>} : vector<2x32xbf16>, vector<32x1xbf16>, vector<2x1xf32> -> vector<2x1xf32>
    %c10 = arith.constant 10 : index
    %c0_54 = arith.constant 0 : index
    %107 = vector.load %arg6[%c10, %c0_54] : memref<11x256xf32, #tpu.memory_space<vmem>>, vector<1x1xf32>
    %108 = vector.broadcast %107 : vector<1x1xf32> to vector<2x1xf32>
    %109 = arith.addf %106, %108 : vector<2x1xf32>
    %110 = arith.negf %109 : vector<2x1xf32>
    %111 = math.exp %110 : vector<2x1xf32>
    %cst_55 = arith.constant 1.000000e+00 : f32
    %112 = vector.broadcast %cst_55 : f32 to vector<2x1xf32>
    %113 = arith.addf %112, %111 : vector<2x1xf32>
    %114 = arith.divf %112, %113 : vector<2x1xf32>
    %c0_56 = arith.constant 0 : index
    %c0_57 = arith.constant 0 : index
    %115 = vector.load %arg7[%c0_56, %c0_57] : memref<22x3xf32, #tpu.memory_space<vmem>>, vector<20x3xf32>
    tpu.vector_store %arg7[%c0_56, %c0_57], %76 {strides = array<i32>} : memref<22x3xf32, #tpu.memory_space<vmem>>, vector<20x3xf32>,
    %116 = vector.shape_cast %114 : vector<2x1xf32> to vector<2x1xf32>
    %117 = vector.broadcast %116 : vector<2x1xf32> to vector<2x3xf32>
    %c20 = arith.constant 20 : index
    %c0_58 = arith.constant 0 : index
    %118 = vector.load %arg7[%c20, %c0_58] : memref<22x3xf32, #tpu.memory_space<vmem>>, vector<2x3xf32>
    tpu.vector_store %arg7[%c20, %c0_58], %117 {strides = array<i32>} : memref<22x3xf32, #tpu.memory_space<vmem>>, vector<2x3xf32>,
    return
  }
}

</mosaic_0001>

<llo_original>
// kernel: tpu_custom_call.1
$region0: #{tpu_custom_call.1}
  #allocation0 [shape = 'u32[]', space=smem, size = 0x4, offset = 0x4, fixed_abs, tag = 'smem constant byte address 0x4 - core index']
  #allocation1 [shape = 'u32[144,128]{1,0:T(1,128)}', space=vmem, size = 0x12000, scoped, tag = 'internal scratch']
  %s0 = inlined_call_operand.vmem [shape: f32[2,512], index: 0, kind: input, shape index: {}]
  %s1 = inlined_call_operand.vmem [shape: f32[2,16], index: 1, kind: input, shape index: {}]
  %s2 = inlined_call_operand.vmem [shape: f32[20,4], index: 2, kind: input, shape index: {}]
  %s3 = inlined_call_operand.vmem [shape: f32[2,12], index: 3, kind: input, shape index: {}]
  %s4 = inlined_call_operand.hbm [shape: bf16[1344,128], index: 4, kind: input, shape index: {}]
  %s5 = inlined_call_operand.hbm [shape: bf16[640,256], index: 5, kind: input, shape index: {}]
  %s6 = inlined_call_operand.vmem [shape: f32[11,256], index: 6, kind: input, shape index: {}]
  %s7 = inlined_call_operand.vmem [shape: f32[22,3], index: 7, kind: output, shape index: {}]
  %s8 = sld [smem:[#allocation0]]
  $region46: #{tpu_custom_call.1} parent=0
    _
  %s10 = ssub.s32 1, %s8
  %s11 = scalar_select 0, %s10, %s8
  $region1: #{tpu_custom_call.1} parent=0
    #allocation2 [shape = 'u8[344064]{0}', space=vmem, size = 0x54000, scoped, tag = 'input window, operand 4, single buffered']
    #allocation3 [shape = 's32[1]{0}', space=sflag, size = 0x4, scoped, tag = 'scoped memory for tpu_custom_call.1']
    #allocation4 [shape = 'u8[327680]{0}', space=vmem, size = 0x50000, scoped, tag = 'input window, operand 5, single buffered']
    #allocation5 [shape = 's32[1]{0}', space=sflag, size = 0x4, scoped, tag = 'scoped memory for tpu_custom_call.1']
    %12 = vsyncpa [#allocation3], 0
    %13 = vsyncpa [#allocation5], 0
    // Predicated region
    $region2: #{tpu_custom_call.1} parent=1 // pred_check
      _
    $region3: #{tpu_custom_call.1} parent=1 // pred_check_branch
      %15 = sbr.rel (0) target = $region5
    $region4: #{tpu_custom_call.1} parent=1 // pred_region
      _
    $region5: #{tpu_custom_call.1} parent=1 // pred_fallthru
      _
    // Predicated region
    $region6: #{tpu_custom_call.1} parent=1 // pred_check
      _
    $region7: #{tpu_custom_call.1} parent=1 // pred_check_branch
      %17 = sbr.rel (0) target = $region9
    $region8: #{tpu_custom_call.1} parent=1 // pred_region
      _
    $region9: #{tpu_custom_call.1} parent=1 // pred_fallthru
      _
    // Predicated region
    $region10: #{tpu_custom_call.1} parent=1 // pred_check
      _
    $region11: #{tpu_custom_call.1} parent=1 // pred_check_branch
      %19 = sbr.rel (0) target = $region13
    $region12: #{tpu_custom_call.1} parent=1 // pred_region
      _
    $region13: #{tpu_custom_call.1} parent=1 // pred_fallthru
      _
    // Predicated region
    $region14: #{tpu_custom_call.1} parent=1 // pred_check
      _
    $region15: #{tpu_custom_call.1} parent=1 // pred_check_branch
      %21 = sbr.rel (0) target = $region17
    $region16: #{tpu_custom_call.1} parent=1 // pred_region
      _
    $region17: #{tpu_custom_call.1} parent=1 // pred_fallthru
      _
    // Predicated region
    $region18: #{tpu_custom_call.1} parent=1 // pred_check
      _
    $region19: #{tpu_custom_call.1} parent=1 // pred_check_branch
      %23 = sbr.rel (0) target = $region21
    $region20: #{tpu_custom_call.1} parent=1 // pred_region
      %s25 = ssub.s32 10752, 10752
      %26 = vsyncadd [#allocation3], %s25
      %s27 = sshll.u32 [#allocation2], 4
      %s28 = int_to_ptr.vmem [resolvable:$true] %s27
      %33 = dma.hbm_to_vmem [thread:$0]  %s4, 10752, %s28, [#allocation3], 64, 64, 4
    $region21: #{tpu_custom_call.1} parent=1 // pred_fallthru
      _
    // Predicated region
    $region22: #{tpu_custom_call.1} parent=1 // pred_check
      _
    $region23: #{tpu_custom_call.1} parent=1 // pred_check_branch
      %35 = sbr.rel (0) target = $region25
    $region24: #{tpu_custom_call.1} parent=1 // pred_region
      %s37 = ssub.s32 10240, 10240
      %38 = vsyncadd [#allocation5], %s37
      %s39 = sshll.u32 [#allocation4], 4
      %s40 = int_to_ptr.vmem [resolvable:$true] %s39
      %45 = dma.hbm_to_vmem [thread:$0]  %s5, 10240, %s40, [#allocation5], 128, 128, 8
    $region25: #{tpu_custom_call.1} parent=1 // pred_fallthru
      _
    // Predicated region
    $region26: #{tpu_custom_call.1} parent=1 // pred_check
      _
    $region27: #{tpu_custom_call.1} parent=1 // pred_check_branch
      %47 = sbr.rel (0) target = $region29
    $region28: #{tpu_custom_call.1} parent=1 // pred_region
      _
    $region29: #{tpu_custom_call.1} parent=1 // pred_fallthru
      _
    // Predicated region
    $region30: #{tpu_custom_call.1} parent=1 // pred_check
      _
    $region31: #{tpu_custom_call.1} parent=1 // pred_check_branch
      %49 = sbr.rel (0) target = $region33
    $region32: #{tpu_custom_call.1} parent=1 // pred_region
      %50 = dma.done [#allocation3], 10752
    $region33: #{tpu_custom_call.1} parent=1 // pred_fallthru
      _
    // Predicated region
    $region34: #{tpu_custom_call.1} parent=1 // pred_check
      _
    $region35: #{tpu_custom_call.1} parent=1 // pred_check_branch
      %52 = sbr.rel (0) target = $region37
    $region36: #{tpu_custom_call.1} parent=1 // pred_region
      %53 = dma.done [#allocation5], 10240
    $region37: #{tpu_custom_call.1} parent=1 // pred_fallthru
      _
    %v55 = vld [vmem:[%s0] sm:$0xff]
    %v56 = vld [vmem:[#allocation2] sm:$0xf]
    %v57 = vld [vmem:[#allocation2 + $0x4] sm:$0xf]
    %v58 = vld [vmem:[#allocation2 + $0x8] sm:$0xf]
    %v59 = vld [vmem:[#allocation2 + $0xc] sm:$0xf]
    %v60 = vld [vmem:[#allocation2 + $0x10] sm:$0xf]
    %v61 = vld [vmem:[#allocation2 + $0x14] sm:$0xf]
    %v62 = vld [vmem:[#allocation2 + $0x18] sm:$0xf]
    %v63 = vld [vmem:[#allocation2 + $0x1c] sm:$0xf]
    %v64 = vld [vmem:[#allocation2 + $0x20] sm:$0xf]
    %v65 = vld [vmem:[#allocation2 + $0x24] sm:$0xf]
    %v66 = vld [vmem:[#allocation2 + $0x28] sm:$0xf]
    %v67 = vld [vmem:[#allocation2 + $0x2c] sm:$0xf]
    %v68 = vld [vmem:[#allocation2 + $0x30] sm:$0xf]
    %v69 = vld [vmem:[#allocation2 + $0x34] sm:$0xf]
    %v70 = vld [vmem:[#allocation2 + $0x38] sm:$0xf]
    %v71 = vld [vmem:[#allocation2 + $0x3c] sm:$0xf]
    %v72 = vld [vmem:[#allocation2 + $0x40] sm:$0xf]
    %v73 = vld [vmem:[#allocation2 + $0x44] sm:$0xf]
    %v74 = vld [vmem:[#allocation2 + $0x48] sm:$0xf]
    %v75 = vld [vmem:[#allocation2 + $0x4c] sm:$0xf]
    %v76 = vld [vmem:[#allocation2 + $0x50] sm:$0xf]
    %v77 = vld [vmem:[#allocation2 + $0x54] sm:$0xf]
    %v78 = vld [vmem:[#allocation2 + $0x58] sm:$0xf]
    %v79 = vld [vmem:[#allocation2 + $0x5c] sm:$0xf]
    %v80 = vld [vmem:[#allocation2 + $0x60] sm:$0xf]
    %v81 = vld [vmem:[#allocation2 + $0x64] sm:$0xf]
    %v82 = vld [vmem:[#allocation2 + $0x68] sm:$0xf]
    %v83 = vld [vmem:[#allocation2 + $0x6c] sm:$0xf]
    %v84 = vld [vmem:[#allocation2 + $0x70] sm:$0xf]
    %v85 = vld [vmem:[#allocation2 + $0x74] sm:$0xf]
    %v86 = vld [vmem:[#allocation2 + $0x78] sm:$0xf]
    %v87 = vld [vmem:[#allocation2 + $0x7c] sm:$0xf]
    %v88 = vld [vmem:[#allocation2 + $0x80] sm:$0xf]
    %v89 = vld [vmem:[#allocation2 + $0x84] sm:$0xf]
    %v90 = vld [vmem:[#allocation2 + $0x88] sm:$0xf]
    %v91 = vld [vmem:[#allocation2 + $0x8c] sm:$0xf]
    %v92 = vld [vmem:[#allocation2 + $0x90] sm:$0xf]
    %v93 = vld [vmem:[#allocation2 + $0x94] sm:$0xf]
    %v94 = vld [vmem:[#allocation2 + $0x98] sm:$0xf]
    %v95 = vld [vmem:[#allocation2 + $0x9c] sm:$0xf]
    %v96 = vld [vmem:[#allocation2 + $0xa0] sm:$0xf]
    %v97 = vld [vmem:[#allocation2 + $0xa4] sm:$0xf]
    %v98 = vld [vmem:[#allocation2 + $0xa8] sm:$0xf]
    %v99 = vld [vmem:[#allocation2 + $0xac] sm:$0xf]
    %v100 = vld [vmem:[#allocation2 + $0xb0] sm:$0xf]
    %v101 = vld [vmem:[#allocation2 + $0xb4] sm:$0xf]
    %v102 = vld [vmem:[#allocation2 + $0xb8] sm:$0xf]
    %v103 = vld [vmem:[#allocation2 + $0xbc] sm:$0xf]
    %v104 = vld [vmem:[#allocation2 + $0xc0] sm:$0xf]
    %v105 = vld [vmem:[#allocation2 + $0xc4] sm:$0xf]
    %v106 = vld [vmem:[#allocation2 + $0xc8] sm:$0xf]
    %v107 = vld [vmem:[#allocation2 + $0xcc] sm:$0xf]
    %v108 = vld [vmem:[#allocation2 + $0xd0] sm:$0xf]
    %v109 = vld [vmem:[#allocation2 + $0xd4] sm:$0xf]
    %v110 = vld [vmem:[#allocation2 + $0xd8] sm:$0xf]
    %v111 = vld [vmem:[#allocation2 + $0xdc] sm:$0xf]
    %v112 = vld [vmem:[#allocation2 + $0xe0] sm:$0xf]
    %v113 = vld [vmem:[#allocation2 + $0xe4] sm:$0xf]
    %v114 = vld [vmem:[#allocation2 + $0xe8] sm:$0xf]
    %v115 = vld [vmem:[#allocation2 + $0xec] sm:$0xf]
    %v116 = vld [vmem:[#allocation2 + $0xf0] sm:$0xf]
    %v117 = vld [vmem:[#allocation2 + $0xf4] sm:$0xf]
    %v118 = vld [vmem:[#allocation2 + $0xf8] sm:$0xf]
    %v119 = vld [vmem:[#allocation2 + $0xfc] sm:$0xf]
    %v121 = vcombine.high %v55, %v55
    %v123 = vunpack.c.l.s4 1983009808
    %v124 = vunpack.c.0.s8 %v123
    %v125 = vlaneseq
    %v126 = vshrl.u32 %v125, 7
    %v127 = vsub.s32 %v124, %v126
    %v128 = vrot.slane %v55, %v127
    %v130 = vunpack.c.l.s4 1983009808
    %v131 = vunpack.c.0.s8 %v130
    %v132 = vlaneseq
    %v133 = vshrl.u32 %v132, 7
    %v134 = vsub.s32 %v131, %v133
    %v135 = vrot.slane %v121, %v134
    %v136 = vcombine.high %v128, %v128
    %v137 = vcombine.high %v135, %v135
    %v142 = vpack.c.bf16 %v128, %v128
    %v143 = vpack.c.bf16 %v136, %v136
    %v144 = vpack.c.bf16 %v135, %v135
    %v145 = vpack.c.bf16 %v137, %v137
    %v146 = vld [vmem:[%s6] ss:$0 sm:$0xff]
    %v211 = vunpack.c.l.b16 %v56
    %v212 = vunpack.c.l.b16 %v57
    %v213 = vunpack.c.l.b16 %v58
    %v214 = vunpack.c.l.b16 %v59
    %v215 = vunpack.c.l.b16 %v60
    %v216 = vunpack.c.l.b16 %v61
    %v217 = vunpack.c.l.b16 %v62
    %v218 = vunpack.c.l.b16 %v63
    %v219 = vunpack.c.l.b16 %v64
    %v220 = vunpack.c.l.b16 %v65
    %v221 = vunpack.c.l.b16 %v66
    %v222 = vunpack.c.l.b16 %v67
    %v223 = vunpack.c.l.b16 %v68
    %v224 = vunpack.c.l.b16 %v69
    %v225 = vunpack.c.l.b16 %v70
    %v226 = vunpack.c.l.b16 %v71
    %v227 = vunpack.c.l.b16 %v72
    %v228 = vunpack.c.l.b16 %v73
    %v229 = vunpack.c.l.b16 %v74
    %v230 = vunpack.c.l.b16 %v75
    %v231 = vunpack.c.l.b16 %v76
    %v232 = vunpack.c.l.b16 %v77
    %v233 = vunpack.c.l.b16 %v78
    %v234 = vunpack.c.l.b16 %v79
    %v235 = vunpack.c.l.b16 %v80
    %v236 = vunpack.c.l.b16 %v81
    %v237 = vunpack.c.l.b16 %v82
    %v238 = vunpack.c.l.b16 %v83
    %v239 = vunpack.c.l.b16 %v84
    %v240 = vunpack.c.l.b16 %v85
    %v241 = vunpack.c.l.b16 %v86
    %v242 = vunpack.c.l.b16 %v87
    %v243 = vunpack.c.l.b16 %v88
    %v244 = vunpack.c.l.b16 %v89
    %v245 = vunpack.c.l.b16 %v90
    %v246 = vunpack.c.l.b16 %v91
    %v247 = vunpack.c.l.b16 %v92
    %v248 = vunpack.c.l.b16 %v93
    %v249 = vunpack.c.l.b16 %v94
    %v250 = vunpack.c.l.b16 %v95
    %v251 = vunpack.c.l.b16 %v96
    %v252 = vunpack.c.l.b16 %v97
    %v253 = vunpack.c.l.b16 %v98
    %v254 = vunpack.c.l.b16 %v99
    %v255 = vunpack.c.l.b16 %v100
    %v256 = vunpack.c.l.b16 %v101
    %v257 = vunpack.c.l.b16 %v102
    %v258 = vunpack.c.l.b16 %v103
    %v259 = vunpack.c.l.b16 %v104
    %v260 = vunpack.c.l.b16 %v105
    %v261 = vunpack.c.l.b16 %v106
    %v262 = vunpack.c.l.b16 %v107
    %v263 = vunpack.c.l.b16 %v108
    %v264 = vunpack.c.l.b16 %v109
    %v265 = vunpack.c.l.b16 %v110
    %v266 = vunpack.c.l.b16 %v111
    %v267 = vunpack.c.l.b16 %v112
    %v268 = vunpack.c.l.b16 %v113
    %v269 = vunpack.c.l.b16 %v114
    %v270 = vunpack.c.l.b16 %v115
    %v271 = vunpack.c.l.b16 %v116
    %v272 = vunpack.c.l.b16 %v117
    %v273 = vunpack.c.l.b16 %v118
    %v274 = vunpack.c.l.b16 %v119
    %v275 = vpack.c.b16 %v212, %v211
    %v276 = vpack.c.b16 %v214, %v213
    %v277 = vpack.c.b16 %v216, %v215
    %v278 = vpack.c.b16 %v218, %v217
    %v279 = vpack.c.b16 %v220, %v219
    %v280 = vpack.c.b16 %v222, %v221
    %v281 = vpack.c.b16 %v224, %v223
    %v282 = vpack.c.b16 %v226, %v225
    %v283 = vpack.c.b16 %v228, %v227
    %v284 = vpack.c.b16 %v230, %v229
    %v285 = vpack.c.b16 %v232, %v231
    %v286 = vpack.c.b16 %v234, %v233
    %v287 = vpack.c.b16 %v236, %v235
    %v288 = vpack.c.b16 %v238, %v237
    %v289 = vpack.c.b16 %v240, %v239
    %v290 = vpack.c.b16 %v242, %v241
    %v291 = vpack.c.b16 %v244, %v243
    %v292 = vpack.c.b16 %v246, %v245
    %v293 = vpack.c.b16 %v248, %v247
    %v294 = vpack.c.b16 %v250, %v249
    %v295 = vpack.c.b16 %v252, %v251
    %v296 = vpack.c.b16 %v254, %v253
    %v297 = vpack.c.b16 %v256, %v255
    %v298 = vpack.c.b16 %v258, %v257
    %v299 = vpack.c.b16 %v260, %v259
    %v300 = vpack.c.b16 %v262, %v261
    %v301 = vpack.c.b16 %v264, %v263
    %v302 = vpack.c.b16 %v266, %v265
    %v303 = vpack.c.b16 %v268, %v267
    %v304 = vpack.c.b16 %v270, %v269
    %v305 = vpack.c.b16 %v272, %v271
    %v306 = vpack.c.b16 %v274, %v273
    %339 = vmatprep.subr.bf16.mxu0 0
    %340 = vmatpush1.bf16.msra.mxu0 %v275
    %341 = vmatprep.subr.bf16.mxu0 0
    %342 = vmatpush1.bf16.msra.mxu0 %v276
    %343 = vmatprep.subr.bf16.mxu0 0
    %344 = vmatpush1.bf16.msra.mxu0 %v277
    %345 = vmatprep.subr.bf16.mxu0 0
    %346 = vmatpush1.bf16.msra.mxu0 %v278
    %347 = vmatprep.subr.bf16.mxu0 0
    %348 = vmatpush1.bf16.msra.mxu0 %v279
    %349 = vmatprep.subr.bf16.mxu0 0
    %350 = vmatpush1.bf16.msra.mxu0 %v280
    %351 = vmatprep.subr.bf16.mxu0 0
    %352 = vmatpush1.bf16.msra.mxu0 %v281
    %353 = vmatprep.subr.bf16.mxu0 0
    %354 = vmatpush1.bf16.msra.mxu0 %v282
    %355 = vmatprep.subr.bf16.mxu0 0
    %356 = vmatpush1.bf16.msra.mxu0 %v283
    %357 = vmatprep.subr.bf16.mxu0 0
    %358 = vmatpush1.bf16.msra.mxu0 %v284
    %359 = vmatprep.subr.bf16.mxu0 0
    %360 = vmatpush1.bf16.msra.mxu0 %v285
    %361 = vmatprep.subr.bf16.mxu0 0
    %362 = vmatpush1.bf16.msra.mxu0 %v286
    %363 = vmatprep.subr.bf16.mxu0 0
    %364 = vmatpush1.bf16.msra.mxu0 %v287
    %365 = vmatprep.subr.bf16.mxu0 0
    %366 = vmatpush1.bf16.msra.mxu0 %v288
    %367 = vmatprep.subr.bf16.mxu0 0
    %368 = vmatpush1.bf16.msra.mxu0 %v289
    %369 = vmatprep.subr.bf16.mxu0 0
    %370 = vmatpush1.bf16.msra.mxu0 %v290
    %371 = vmatprep.mubr.bf16.mxu0 %v143
    %372 = vmatmul.mubr.bf16.gmra.mrb[0].mxu0 %v142
    %v373 = vpop.f32.mrb[0].mxu0
    %v374 = vadd.f32 %v146, %v373
    %v375 = vpop.f32.mrb[0].mxu0
    %v376 = vpop.f32.mrb[0].mxu0
    %v377 = vpop.f32.mrb[0].mxu0
    %378 = vdwg.mxu0
    %379 = vmatprep.subr.bf16.mxu0 0
    %380 = vmatpush1.bf16.msra.mxu0 %v291
    %381 = vmatprep.subr.bf16.mxu0 0
    %382 = vmatpush1.bf16.msra.mxu0 %v292
    %383 = vmatprep.subr.bf16.mxu0 0
    %384 = vmatpush1.bf16.msra.mxu0 %v293
    %385 = vmatprep.subr.bf16.mxu0 0
    %386 = vmatpush1.bf16.msra.mxu0 %v294
    %387 = vmatprep.subr.bf16.mxu0 0
    %388 = vmatpush1.bf16.msra.mxu0 %v295
    %389 = vmatprep.subr.bf16.mxu0 0
    %390 = vmatpush1.bf16.msra.mxu0 %v296
    %391 = vmatprep.subr.bf16.mxu0 0
    %392 = vmatpush1.bf16.msra.mxu0 %v297
    %393 = vmatprep.subr.bf16.mxu0 0
    %394 = vmatpush1.bf16.msra.mxu0 %v298
    %395 = vmatprep.subr.bf16.mxu0 0
    %396 = vmatpush1.bf16.msra.mxu0 %v299
    %397 = vmatprep.subr.bf16.mxu0 0
    %398 = vmatpush1.bf16.msra.mxu0 %v300
    %399 = vmatprep.subr.bf16.mxu0 0
    %400 = vmatpush1.bf16.msra.mxu0 %v301
    %401 = vmatprep.subr.bf16.mxu0 0
    %402 = vmatpush1.bf16.msra.mxu0 %v302
    %403 = vmatprep.subr.bf16.mxu0 0
    %404 = vmatpush1.bf16.msra.mxu0 %v303
    %405 = vmatprep.subr.bf16.mxu0 0
    %406 = vmatpush1.bf16.msra.mxu0 %v304
    %407 = vmatprep.subr.bf16.mxu0 0
    %408 = vmatpush1.bf16.msra.mxu0 %v305
    %409 = vmatprep.subr.bf16.mxu0 0
    %410 = vmatpush1.bf16.msra.mxu0 %v306
    %411 = vmatprep.mubr.bf16.mxu0 %v145
    %412 = vmatmul.mubr.bf16.gmra.mrb[0].mxu0 %v144
    %v413 = vpop.f32.mrb[0].mxu0
    %v414 = vadd.f32 %v374, %v413
    %v415 = vpop.f32.mrb[0].mxu0
    %v416 = vpop.f32.mrb[0].mxu0
    %v417 = vpop.f32.mrb[0].mxu0
    %418 = vdwg.mxu0
    %v419 = vmax.f32 %v414, 0.0
    %v420 = vld [vmem:[#allocation2 + $0x100] sm:$0xf]
    %v421 = vld [vmem:[#allocation2 + $0x104] sm:$0xf]
    %v422 = vld [vmem:[#allocation2 + $0x108] sm:$0xf]
    %v423 = vld [vmem:[#allocation2 + $0x10c] sm:$0xf]
    %v424 = vld [vmem:[#allocation2 + $0x110] sm:$0xf]
    %v425 = vld [vmem:[#allocation2 + $0x114] sm:$0xf]
    %v426 = vld [vmem:[#allocation2 + $0x118] sm:$0xf]
    %v427 = vld [vmem:[#allocation2 + $0x11c] sm:$0xf]
    %v428 = vld [vmem:[#allocation2 + $0x120] sm:$0xf]
    %v429 = vld [vmem:[#allocation2 + $0x124] sm:$0xf]
    %v430 = vld [vmem:[#allocation2 + $0x128] sm:$0xf]
    %v431 = vld [vmem:[#allocation2 + $0x12c] sm:$0xf]
    %v432 = vld [vmem:[#allocation2 + $0x130] sm:$0xf]
    %v433 = vld [vmem:[#allocation2 + $0x134] sm:$0xf]
    %v434 = vld [vmem:[#allocation2 + $0x138] sm:$0xf]
    %v435 = vld [vmem:[#allocation2 + $0x13c] sm:$0xf]
    %v436 = vpack.c.bf16 %v419, %v419
    %v437 = vld [vmem:[%s6 + $0x1] ss:$0 sm:$0xff]
    %v454 = vunpack.c.l.b16 %v420
    %v455 = vunpack.c.l.b16 %v421
    %v456 = vunpack.c.l.b16 %v422
    %v457 = vunpack.c.l.b16 %v423
    %v458 = vunpack.c.l.b16 %v424
    %v459 = vunpack.c.l.b16 %v425
    %v460 = vunpack.c.l.b16 %v426
    %v461 = vunpack.c.l.b16 %v427
    %v462 = vunpack.c.l.b16 %v428
    %v463 = vunpack.c.l.b16 %v429
    %v464 = vunpack.c.l.b16 %v430
    %v465 = vunpack.c.l.b16 %v431
    %v466 = vunpack.c.l.b16 %v432
    %v467 = vunpack.c.l.b16 %v433
    %v468 = vunpack.c.l.b16 %v434
    %v469 = vunpack.c.l.b16 %v435
    %v470 = vpack.c.b16 %v455, %v454
    %v471 = vpack.c.b16 %v457, %v456
    %v472 = vpack.c.b16 %v459, %v458
    %v473 = vpack.c.b16 %v461, %v460
    %v474 = vpack.c.b16 %v463, %v462
    %v475 = vpack.c.b16 %v465, %v464
    %v476 = vpack.c.b16 %v467, %v466
    %v477 = vpack.c.b16 %v469, %v468
    %486 = vmatprep.subr.bf16.mxu0 0
    %487 = vmatpush1.bf16.msra.mxu0 %v470
    %488 = vmatprep.subr.bf16.mxu0 0
    %489 = vmatpush1.bf16.msra.mxu0 %v471
    %490 = vmatprep.subr.bf16.mxu0 0
    %491 = vmatpush1.bf16.msra.mxu0 %v472
    %492 = vmatprep.subr.bf16.mxu0 0
    %493 = vmatpush1.bf16.msra.mxu0 %v473
    %494 = vmatprep.subr.bf16.mxu0 0
    %495 = vmatpush1.bf16.msra.mxu0 %v474
    %496 = vmatprep.subr.bf16.mxu0 0
    %497 = vmatpush1.bf16.msra.mxu0 %v475
    %498 = vmatprep.subr.bf16.mxu0 0
    %499 = vmatpush1.bf16.msra.mxu0 %v476
    %500 = vmatprep.subr.bf16.mxu0 0
    %501 = vmatpush1.bf16.msra.mxu0 %v477
    %502 = vmatprep.subr.bf16.mxu0 0
    %503 = vmatpush1.bf16.msra.mxu0 0
    %504 = vmatprep.subr.bf16.mxu0 0
    %505 = vmatpush1.bf16.msra.mxu0 0
    %506 = vmatprep.subr.bf16.mxu0 0
    %507 = vmatpush1.bf16.msra.mxu0 0
    %508 = vmatprep.subr.bf16.mxu0 0
    %509 = vmatpush1.bf16.msra.mxu0 0
    %510 = vmatprep.subr.bf16.mxu0 0
    %511 = vmatpush1.bf16.msra.mxu0 0
    %512 = vmatprep.subr.bf16.mxu0 0
    %513 = vmatpush1.bf16.msra.mxu0 0
    %514 = vmatprep.subr.bf16.mxu0 0
    %515 = vmatpush1.bf16.msra.mxu0 0
    %516 = vmatprep.subr.bf16.mxu0 0
    %517 = vmatpush1.bf16.msra.mxu0 0
    %518 = vmatprep.mubr.bf16.mxu0 0
    %519 = vmatmul.mubr.bf16.gmra.mrb[0].mxu0 %v436
    %v520 = vpop.f32.mrb[0].mxu0
    %v521 = vadd.f32 %v437, %v520
    %v522 = vpop.f32.mrb[0].mxu0
    %v523 = vpop.f32.mrb[0].mxu0
    %v524 = vpop.f32.mrb[0].mxu0
    %525 = vdwg.mxu0
    %v526 = vmax.f32 %v521, 0.0
    %v527 = vld [vmem:[#allocation2 + $0x140] sm:$0xf]
    %v528 = vld [vmem:[#allocation2 + $0x144] sm:$0xf]
    %v529 = vld [vmem:[#allocation2 + $0x148] sm:$0xf]
    %v530 = vld [vmem:[#allocation2 + $0x14c] sm:$0xf]
    %v531 = vpack.c.bf16 %v526, %v526
    %v532 = vld [vmem:[%s6 + $0x2] ss:$0 sm:$0xff]
    %v537 = vunpack.c.l.b16 %v527
    %v538 = vunpack.c.l.b16 %v528
    %v539 = vunpack.c.l.b16 %v529
    %v540 = vunpack.c.l.b16 %v530
    %v541 = vpack.c.b16 %v538, %v537
    %v542 = vpack.c.b16 %v540, %v539
    %vm545 = vcmask 261120
    %v547 = vsel %vm545, %v531, 0
    %549 = vmatprep.subr.bf16.mxu0 0
    %550 = vmatpush1.bf16.msra.mxu0 %v541
    %551 = vmatprep.subr.bf16.mxu0 0
    %552 = vmatpush1.bf16.msra.mxu0 %v542
    %553 = vmatprep.subr.bf16.mxu0 0
    %554 = vmatpush1.bf16.msra.mxu0 0
    %555 = vmatprep.subr.bf16.mxu0 0
    %556 = vmatpush1.bf16.msra.mxu0 0
    %557 = vmatprep.subr.bf16.mxu0 0
    %558 = vmatpush1.bf16.msra.mxu0 0
    %559 = vmatprep.subr.bf16.mxu0 0
    %560 = vmatpush1.bf16.msra.mxu0 0
    %561 = vmatprep.subr.bf16.mxu0 0
    %562 = vmatpush1.bf16.msra.mxu0 0
    %563 = vmatprep.subr.bf16.mxu0 0
    %564 = vmatpush1.bf16.msra.mxu0 0
    %565 = vmatprep.subr.bf16.mxu0 0
    %566 = vmatpush1.bf16.msra.mxu0 0
    %567 = vmatprep.subr.bf16.mxu0 0
    %568 = vmatpush1.bf16.msra.mxu0 0
    %569 = vmatprep.subr.bf16.mxu0 0
    %570 = vmatpush1.bf16.msra.mxu0 0
    %571 = vmatprep.subr.bf16.mxu0 0
    %572 = vmatpush1.bf16.msra.mxu0 0
    %573 = vmatprep.subr.bf16.mxu0 0
    %574 = vmatpush1.bf16.msra.mxu0 0
    %575 = vmatprep.subr.bf16.mxu0 0
    %576 = vmatpush1.bf16.msra.mxu0 0
    %577 = vmatprep.subr.bf16.mxu0 0
    %578 = vmatpush1.bf16.msra.mxu0 0
    %579 = vmatprep.subr.bf16.mxu0 0
    %580 = vmatpush1.bf16.msra.mxu0 0
    %581 = vmatprep.mubr.bf16.mxu0 0
    %582 = vmatmul.mubr.bf16.gmra.mrb[0].mxu0 %v547
    %v583 = vpop.f32.mrb[0].mxu0
    %v584 = vadd.f32 %v532, %v583
    %v585 = vpop.f32.mrb[0].mxu0
    %v586 = vpop.f32.mrb[0].mxu0
    %v587 = vpop.f32.mrb[0].mxu0
    %588 = vdwg.mxu0
    %v589 = vld [vmem:[#allocation2 + $0x150] sm:$0xf]
    %v590 = vpack.c.bf16 %v584, %v584
    %v591 = vld [vmem:[%s1] sm:$0x3]
    %v592 = vld [vmem:[#allocation2 + $0x158] sm:$0xf]
    %v593 = vld [vmem:[#allocation2 + $0x15c] sm:$0xf]
    %v594 = vpack.c.bf16 %v591, %v591
    %v597 = vunpack.c.l.b16 %v592
    %v598 = vunpack.c.l.b16 %v593
    %v599 = vpack.c.b16 %v598, %v597
    %vm601 = vcmask 130048
    %v603 = vsel %vm601, %v594, 0
    %605 = vmatprep.subr.bf16.mxu0 0
    %606 = vmatpush1.bf16.msra.mxu0 %v599
    %607 = vmatprep.subr.bf16.mxu0 0
    %608 = vmatpush1.bf16.msra.mxu0 0
    %609 = vmatprep.subr.bf16.mxu0 0
    %610 = vmatpush1.bf16.msra.mxu0 0
    %611 = vmatprep.subr.bf16.mxu0 0
    %612 = vmatpush1.bf16.msra.mxu0 0
    %613 = vmatprep.subr.bf16.mxu0 0
    %614 = vmatpush1.bf16.msra.mxu0 0
    %615 = vmatprep.subr.bf16.mxu0 0
    %616 = vmatpush1.bf16.msra.mxu0 0
    %617 = vmatprep.subr.bf16.mxu0 0
    %618 = vmatpush1.bf16.msra.mxu0 0
    %619 = vmatprep.subr.bf16.mxu0 0
    %620 = vmatpush1.bf16.msra.mxu0 0
    %621 = vmatprep.subr.bf16.mxu0 0
    %622 = vmatpush1.bf16.msra.mxu0 0
    %623 = vmatprep.subr.bf16.mxu0 0
    %624 = vmatpush1.bf16.msra.mxu0 0
    %625 = vmatprep.subr.bf16.mxu0 0
    %626 = vmatpush1.bf16.msra.mxu0 0
    %627 = vmatprep.subr.bf16.mxu0 0
    %628 = vmatpush1.bf16.msra.mxu0 0
    %629 = vmatprep.subr.bf16.mxu0 0
    %630 = vmatpush1.bf16.msra.mxu0 0
    %631 = vmatprep.subr.bf16.mxu0 0
    %632 = vmatpush1.bf16.msra.mxu0 0
    %633 = vmatprep.subr.bf16.mxu0 0
    %634 = vmatpush1.bf16.msra.mxu0 0
    %635 = vmatprep.subr.bf16.mxu0 0
    %636 = vmatpush1.bf16.msra.mxu0 0
    %637 = vmatprep.mubr.bf16.mxu0 0
    %638 = vmatmul.mubr.bf16.gmra.mrb[0].mxu0 %v603
    %v639 = vpop.f32.mrb[0].mxu0
    %v640 = vadd.f32 0.0, %v639
    %v641 = vpop.f32.mrb[0].mxu0
    %v642 = vpop.f32.mrb[0].mxu0
    %v643 = vpop.f32.mrb[0].mxu0
    %644 = vdwg.mxu0
    %vm645 = vcmask 64512
    %v647 = vsel %vm645, %v590, 0
    %vm649 = vcmask 1043456
    %v651 = vsel %vm649, %v589, 0
    %653 = vmatprep.subr.bf16.mxu0 0
    %654 = vmatpush1.bf16.msra.mxu0 %v651
    %655 = vmatprep.subr.bf16.mxu0 0
    %656 = vmatpush1.bf16.msra.mxu0 0
    %657 = vmatprep.subr.bf16.mxu0 0
    %658 = vmatpush1.bf16.msra.mxu0 0
    %659 = vmatprep.subr.bf16.mxu0 0
    %660 = vmatpush1.bf16.msra.mxu0 0
    %661 = vmatprep.subr.bf16.mxu0 0
    %662 = vmatpush1.bf16.msra.mxu0 0
    %663 = vmatprep.subr.bf16.mxu0 0
    %664 = vmatpush1.bf16.msra.mxu0 0
    %665 = vmatprep.subr.bf16.mxu0 0
    %666 = vmatpush1.bf16.msra.mxu0 0
    %667 = vmatprep.subr.bf16.mxu0 0
    %668 = vmatpush1.bf16.msra.mxu0 0
    %669 = vmatprep.subr.bf16.mxu0 0
    %670 = vmatpush1.bf16.msra.mxu0 0
    %671 = vmatprep.subr.bf16.mxu0 0
    %672 = vmatpush1.bf16.msra.mxu0 0
    %673 = vmatprep.subr.bf16.mxu0 0
    %674 = vmatpush1.bf16.msra.mxu0 0
    %675 = vmatprep.subr.bf16.mxu0 0
    %676 = vmatpush1.bf16.msra.mxu0 0
    %677 = vmatprep.subr.bf16.mxu0 0
    %678 = vmatpush1.bf16.msra.mxu0 0
    %679 = vmatprep.subr.bf16.mxu0 0
    %680 = vmatpush1.bf16.msra.mxu0 0
    %681 = vmatprep.subr.bf16.mxu0 0
    %682 = vmatpush1.bf16.msra.mxu0 0
    %683 = vmatprep.subr.bf16.mxu0 0
    %684 = vmatpush1.bf16.msra.mxu0 0
    %685 = vmatprep.mubr.bf16.mxu0 0
    %686 = vmatmul.mubr.bf16.gmra.mrb[0].mxu0 %v647
    %v687 = vpop.f32.mrb[0].mxu0
    %v688 = vadd.f32 %v640, %v687
    %v689 = vpop.f32.mrb[0].mxu0
    %v690 = vpop.f32.mrb[0].mxu0
    %v691 = vpop.f32.mrb[0].mxu0
    %692 = vdwg.mxu0
    %v693 = vld [vmem:[%s6 + $0x3] ss:$0 sm:$0xff]
    %v694 = vadd.f32 %v688, %v693
    %v695 = vmax.f32 %v694, 0.0
    %v696 = vld [vmem:[#allocation4] sm:$0xff]
    %v697 = vld [vmem:[#allocation4 + $0x8] sm:$0xff]
    %v698 = vld [vmem:[#allocation4 + $0x10] sm:$0xff]
    %v699 = vld [vmem:[#allocation4 + $0x18] sm:$0xff]
    %v700 = vld [vmem:[#allocation4 + $0x20] sm:$0xff]
    %v701 = vld [vmem:[#allocation4 + $0x28] sm:$0xff]
    %v702 = vld [vmem:[#allocation4 + $0x30] sm:$0xff]
    %v703 = vld [vmem:[#allocation4 + $0x38] sm:$0xff]
    %v704 = vld [vmem:[#allocation4 + $0x40] sm:$0xff]
    %v705 = vld [vmem:[#allocation4 + $0x48] sm:$0xff]
    %v706 = vld [vmem:[#allocation4 + $0x50] sm:$0xff]
    %v707 = vld [vmem:[#allocation4 + $0x58] sm:$0xff]
    %v708 = vld [vmem:[#allocation4 + $0x60] sm:$0xff]
    %v709 = vld [vmem:[#allocation4 + $0x68] sm:$0xff]
    %v710 = vld [vmem:[#allocation4 + $0x70] sm:$0xff]
    %v711 = vld [vmem:[#allocation4 + $0x78] sm:$0xff]
    %v712 = vpack.c.bf16 %v695, %v695
    %s713 = scalar_lea.vmem %s6, 4
    %v714 = vld [vmem:[%s713] ss:$8 sm:$0x3]
    %v716 = vlaneseq
    %v717 = vshrl.u32 %v716, 7
    %v718 = vsub.s32 0, %v717
    %v719 = vrot.slane %v714, %v718
    %v720 = vlaneseq
    %v721 = vshrl.u32 %v720, 7
    %v722 = vsub.s32 1, %v721
    %v723 = vrot.slane %v714, %v722
    %v742 = vunpack.c.l.b16 %v696
    %v743 = vunpack.c.h.b16 %v696
    %v744 = vunpack.c.l.b16 %v697
    %v745 = vunpack.c.h.b16 %v697
    %v746 = vunpack.c.l.b16 %v698
    %v747 = vunpack.c.h.b16 %v698
    %v748 = vunpack.c.l.b16 %v699
    %v749 = vunpack.c.h.b16 %v699
    %v750 = vunpack.c.l.b16 %v700
    %v751 = vunpack.c.h.b16 %v700
    %v752 = vunpack.c.l.b16 %v701
    %v753 = vunpack.c.h.b16 %v701
    %v754 = vunpack.c.l.b16 %v702
    %v755 = vunpack.c.h.b16 %v702
    %v756 = vunpack.c.l.b16 %v703
    %v757 = vunpack.c.h.b16 %v703
    %v758 = vunpack.c.l.b16 %v704
    %v759 = vunpack.c.h.b16 %v704
    %v760 = vunpack.c.l.b16 %v705
    %v761 = vunpack.c.h.b16 %v705
    %v762 = vunpack.c.l.b16 %v706
    %v763 = vunpack.c.h.b16 %v706
    %v764 = vunpack.c.l.b16 %v707
    %v765 = vunpack.c.h.b16 %v707
    %v766 = vunpack.c.l.b16 %v708
    %v767 = vunpack.c.h.b16 %v708
    %v768 = vunpack.c.l.b16 %v709
    %v769 = vunpack.c.h.b16 %v709
    %v770 = vunpack.c.l.b16 %v710
    %v771 = vunpack.c.h.b16 %v710
    %v772 = vunpack.c.l.b16 %v711
    %v773 = vunpack.c.h.b16 %v711
    %v774 = vpack.c.b16 %v744, %v742
    %v775 = vpack.c.b16 %v745, %v743
    %v776 = vpack.c.b16 %v748, %v746
    %v777 = vpack.c.b16 %v749, %v747
    %v778 = vpack.c.b16 %v752, %v750
    %v779 = vpack.c.b16 %v753, %v751
    %v780 = vpack.c.b16 %v756, %v754
    %v781 = vpack.c.b16 %v757, %v755
    %v782 = vpack.c.b16 %v760, %v758
    %v783 = vpack.c.b16 %v761, %v759
    %v784 = vpack.c.b16 %v764, %v762
    %v785 = vpack.c.b16 %v765, %v763
    %v786 = vpack.c.b16 %v768, %v766
    %v787 = vpack.c.b16 %v769, %v767
    %v788 = vpack.c.b16 %v772, %v770
    %v789 = vpack.c.b16 %v773, %v771
    %806 = vmatprep.subr.bf16.mxu0 %v775
    %807 = vmatpush1.bf16.msra.mxu0 %v774
    %808 = vmatprep.subr.bf16.mxu0 %v777
    %809 = vmatpush1.bf16.msra.mxu0 %v776
    %810 = vmatprep.subr.bf16.mxu0 %v779
    %811 = vmatpush1.bf16.msra.mxu0 %v778
    %812 = vmatprep.subr.bf16.mxu0 %v781
    %813 = vmatpush1.bf16.msra.mxu0 %v780
    %814 = vmatprep.subr.bf16.mxu0 %v783
    %815 = vmatpush1.bf16.msra.mxu0 %v782
    %816 = vmatprep.subr.bf16.mxu0 %v785
    %817 = vmatpush1.bf16.msra.mxu0 %v784
    %818 = vmatprep.subr.bf16.mxu0 %v787
    %819 = vmatpush1.bf16.msra.mxu0 %v786
    %820 = vmatprep.subr.bf16.mxu0 %v789
    %821 = vmatpush1.bf16.msra.mxu0 %v788
    %822 = vmatprep.subr.bf16.mxu0 0
    %823 = vmatpush1.bf16.msra.mxu0 0
    %824 = vmatprep.subr.bf16.mxu0 0
    %825 = vmatpush1.bf16.msra.mxu0 0
    %826 = vmatprep.subr.bf16.mxu0 0
    %827 = vmatpush1.bf16.msra.mxu0 0
    %828 = vmatprep.subr.bf16.mxu0 0
    %829 = vmatpush1.bf16.msra.mxu0 0
    %830 = vmatprep.subr.bf16.mxu0 0
    %831 = vmatpush1.bf16.msra.mxu0 0
    %832 = vmatprep.subr.bf16.mxu0 0
    %833 = vmatpush1.bf16.msra.mxu0 0
    %834 = vmatprep.subr.bf16.mxu0 0
    %835 = vmatpush1.bf16.msra.mxu0 0
    %836 = vmatprep.subr.bf16.mxu0 0
    %837 = vmatpush1.bf16.msra.mxu0 0
    %838 = vmatprep.mubr.bf16.mxu0 0
    %839 = vmatmul.mubr.bf16.gmra.mrb[0].mxu0 %v712
    %v840 = vpop.f32.mrb[0].mxu0
    %v841 = vadd.f32 %v719, %v840
    %v842 = vpop.f32.mrb[0].mxu0
    %v843 = vadd.f32 %v723, %v842
    %v844 = vpop.f32.mrb[0].mxu0
    %v845 = vpop.f32.mrb[0].mxu0
    %846 = vdwg.mxu0
    %v847 = vld [vmem:[#allocation2 + $0x160] sm:$0xf]
    %v848 = vld [vmem:[#allocation2 + $0x164] sm:$0xf]
    %v849 = vld [vmem:[#allocation2 + $0x168] sm:$0xf]
    %v850 = vld [vmem:[#allocation2 + $0x16c] sm:$0xf]
    %v851 = vld [vmem:[#allocation2 + $0x170] sm:$0xf]
    %v852 = vld [vmem:[#allocation2 + $0x174] sm:$0xf]
    %v853 = vld [vmem:[#allocation2 + $0x178] sm:$0xf]
    %v854 = vld [vmem:[#allocation2 + $0x17c] sm:$0xf]
    %v855 = vld [vmem:[#allocation2 + $0x180] sm:$0xf]
    %v856 = vld [vmem:[#allocation2 + $0x184] sm:$0xf]
    %v857 = vld [vmem:[#allocation2 + $0x188] sm:$0xf]
    %v858 = vld [vmem:[#allocation2 + $0x18c] sm:$0xf]
    %v859 = vld [vmem:[#allocation2 + $0x190] sm:$0xf]
    %v860 = vld [vmem:[#allocation2 + $0x194] sm:$0xf]
    %v861 = vld [vmem:[#allocation2 + $0x198] sm:$0xf]
    %v862 = vld [vmem:[#allocation2 + $0x19c] sm:$0xf]
    %v863 = vld [vmem:[#allocation2 + $0x1a0] sm:$0xf]
    %v864 = vld [vmem:[#allocation2 + $0x1a4] sm:$0xf]
    %v865 = vld [vmem:[#allocation2 + $0x1a8] sm:$0xf]
    %v866 = vld [vmem:[#allocation2 + $0x1ac] sm:$0xf]
    %v867 = vld [vmem:[#allocation2 + $0x1b0] sm:$0xf]
    %v868 = vld [vmem:[#allocation2 + $0x1b4] sm:$0xf]
    %v869 = vld [vmem:[#allocation2 + $0x1b8] sm:$0xf]
    %v870 = vld [vmem:[#allocation2 + $0x1bc] sm:$0xf]
    %v871 = vld [vmem:[#allocation2 + $0x1c0] sm:$0xf]
    %v872 = vld [vmem:[#allocation2 + $0x1c4] sm:$0xf]
    %v873 = vld [vmem:[#allocation2 + $0x1c8] sm:$0xf]
    %v874 = vld [vmem:[#allocation2 + $0x1cc] sm:$0xf]
    %v875 = vld [vmem:[#allocation2 + $0x1d0] sm:$0xf]
    %v876 = vld [vmem:[#allocation2 + $0x1d4] sm:$0xf]
    %v877 = vld [vmem:[#allocation2 + $0x1d8] sm:$0xf]
    %v878 = vld [vmem:[#allocation2 + $0x1dc] sm:$0xf]
    %v879 = vpack.c.bf16 %v841, %v841
    %v880 = vpack.c.bf16 %v843, %v843
    %v913 = vunpack.c.l.b16 %v847
    %v914 = vunpack.c.l.b16 %v848
    %v915 = vunpack.c.l.b16 %v849
    %v916 = vunpack.c.l.b16 %v850
    %v917 = vunpack.c.l.b16 %v851
    %v918 = vunpack.c.l.b16 %v852
    %v919 = vunpack.c.l.b16 %v853
    %v920 = vunpack.c.l.b16 %v854
    %v921 = vunpack.c.l.b16 %v855
    %v922 = vunpack.c.l.b16 %v856
    %v923 = vunpack.c.l.b16 %v857
    %v924 = vunpack.c.l.b16 %v858
    %v925 = vunpack.c.l.b16 %v859
    %v926 = vunpack.c.l.b16 %v860
    %v927 = vunpack.c.l.b16 %v861
    %v928 = vunpack.c.l.b16 %v862
    %v929 = vunpack.c.l.b16 %v863
    %v930 = vunpack.c.l.b16 %v864
    %v931 = vunpack.c.l.b16 %v865
    %v932 = vunpack.c.l.b16 %v866
    %v933 = vunpack.c.l.b16 %v867
    %v934 = vunpack.c.l.b16 %v868
    %v935 = vunpack.c.l.b16 %v869
    %v936 = vunpack.c.l.b16 %v870
    %v937 = vunpack.c.l.b16 %v871
    %v938 = vunpack.c.l.b16 %v872
    %v939 = vunpack.c.l.b16 %v873
    %v940 = vunpack.c.l.b16 %v874
    %v941 = vunpack.c.l.b16 %v875
    %v942 = vunpack.c.l.b16 %v876
    %v943 = vunpack.c.l.b16 %v877
    %v944 = vunpack.c.l.b16 %v878
    %v945 = vpack.c.b16 %v914, %v913
    %v946 = vpack.c.b16 %v916, %v915
    %v947 = vpack.c.b16 %v918, %v917
    %v948 = vpack.c.b16 %v920, %v919
    %v949 = vpack.c.b16 %v922, %v921
    %v950 = vpack.c.b16 %v924, %v923
    %v951 = vpack.c.b16 %v926, %v925
    %v952 = vpack.c.b16 %v928, %v927
    %v953 = vpack.c.b16 %v930, %v929
    %v954 = vpack.c.b16 %v932, %v931
    %v955 = vpack.c.b16 %v934, %v933
    %v956 = vpack.c.b16 %v936, %v935
    %v957 = vpack.c.b16 %v938, %v937
    %v958 = vpack.c.b16 %v940, %v939
    %v959 = vpack.c.b16 %v942, %v941
    %v960 = vpack.c.b16 %v944, %v943
    %977 = vmatprep.subr.bf16.mxu0 0
    %978 = vmatpush1.bf16.msra.mxu0 %v945
    %979 = vmatprep.subr.bf16.mxu0 0
    %980 = vmatpush1.bf16.msra.mxu0 %v946
    %981 = vmatprep.subr.bf16.mxu0 0
    %982 = vmatpush1.bf16.msra.mxu0 %v947
    %983 = vmatprep.subr.bf16.mxu0 0
    %984 = vmatpush1.bf16.msra.mxu0 %v948
    %985 = vmatprep.subr.bf16.mxu0 0
    %986 = vmatpush1.bf16.msra.mxu0 %v949
    %987 = vmatprep.subr.bf16.mxu0 0
    %988 = vmatpush1.bf16.msra.mxu0 %v950
    %989 = vmatprep.subr.bf16.mxu0 0
    %990 = vmatpush1.bf16.msra.mxu0 %v951
    %991 = vmatprep.subr.bf16.mxu0 0
    %992 = vmatpush1.bf16.msra.mxu0 %v952
    %993 = vmatprep.subr.bf16.mxu0 0
    %994 = vmatpush1.bf16.msra.mxu0 %v953
    %995 = vmatprep.subr.bf16.mxu0 0
    %996 = vmatpush1.bf16.msra.mxu0 %v954
    %997 = vmatprep.subr.bf16.mxu0 0
    %998 = vmatpush1.bf16.msra.mxu0 %v955
    %999 = vmatprep.subr.bf16.mxu0 0
    %1000 = vmatpush1.bf16.msra.mxu0 %v956
    %1001 = vmatprep.subr.bf16.mxu0 0
    %1002 = vmatpush1.bf16.msra.mxu0 %v957
    %1003 = vmatprep.subr.bf16.mxu0 0
    %1004 = vmatpush1.bf16.msra.mxu0 %v958
    %1005 = vmatprep.subr.bf16.mxu0 0
    %1006 = vmatpush1.bf16.msra.mxu0 %v959
    %1007 = vmatprep.subr.bf16.mxu0 0
    %1008 = vmatpush1.bf16.msra.mxu0 %v960
    %1009 = vmatprep.mubr.bf16.mxu0 %v880
    %1010 = vmatmul.mubr.bf16.gmra.mrb[0].mxu0 %v879
    %v1011 = vpop.f32.mrb[0].mxu0
    %v1012 = vadd.f32 0.0, %v1011
    %v1013 = vpop.f32.mrb[0].mxu0
    %v1014 = vpop.f32.mrb[0].mxu0
    %v1015 = vpop.f32.mrb[0].mxu0
    %1016 = vdwg.mxu0
    %v1017 = vlaneseq
    %v1018 = vshrl.u32 %v1017, 7
    %v1019 = vadd.s32 %v1018, 8
    %v1020 = vadd.s32 %v1018, 16
    %v1021 = vlaneseq
    %v1022 = vshrl.u32 %v1021, 7
    %v1023 = vsub.s32 0, %v1022
    %v1024 = vrot.slane %v1012, %v1023
    %vm1025 = vcmp.ge.s32.totalorder %v1018, 10
    %vm1026 = vcmp.ge.s32.totalorder %v1019, 10
    %vm1027 = vcmp.ge.s32.totalorder %v1020, 10
    %v1028 = vlaneseq
    %v1029 = vshrl.u32 %v1028, 7
    %v1030 = vsub.s32 1, %v1029
    %v1031 = vrot.slane %v1012, %v1030
    %v1032 = vsel %vm1025, %v1031, %v1024
    %v1033 = vsel %vm1026, %v1031, %v1024
    %v1034 = vsel %vm1027, %v1031, %v1024
    %v1035 = vld [vmem:[%s2] sm:$0xff]
    %v1036 = vld [vmem:[%s2 + $0x8] sm:$0xff]
    %v1037 = vld [vmem:[%s2 + $0x10] sm:$0xf]
    %v1038 = vld [vmem:[#allocation2 + $0x1e0] sm:$0x3]
    %v1039 = vpack.c.bf16 %v1036, %v1035
    %v1040 = vpack.c.bf16 %v1037, %v1037
    %vm1041 = vcmask 31744
    %v1043 = vsel %vm1041, %v1039, 0
    %v1046 = vsel %vm1041, %v1040, 0
    %vm1048 = vcmask 1041408
    %v1050 = vsel %vm1048, %v1038, 0
    %1052 = vmatprep.subr.bf16.mxu0 0
    %1053 = vmatpush1.bf16.msra.mxu0 %v1050
    %1054 = vmatprep.subr.bf16.mxu0 0
    %1055 = vmatpush1.bf16.msra.mxu0 0
    %1056 = vmatprep.subr.bf16.mxu0 0
    %1057 = vmatpush1.bf16.msra.mxu0 0
    %1058 = vmatprep.subr.bf16.mxu0 0
    %1059 = vmatpush1.bf16.msra.mxu0 0
    %1060 = vmatprep.subr.bf16.mxu0 0
    %1061 = vmatpush1.bf16.msra.mxu0 0
    %1062 = vmatprep.subr.bf16.mxu0 0
    %1063 = vmatpush1.bf16.msra.mxu0 0
    %1064 = vmatprep.subr.bf16.mxu0 0
    %1065 = vmatpush1.bf16.msra.mxu0 0
    %1066 = vmatprep.subr.bf16.mxu0 0
    %1067 = vmatpush1.bf16.msra.mxu0 0
    %1068 = vmatprep.subr.bf16.mxu0 0
    %1069 = vmatpush1.bf16.msra.mxu0 0
    %1070 = vmatprep.subr.bf16.mxu0 0
    %1071 = vmatpush1.bf16.msra.mxu0 0
    %1072 = vmatprep.subr.bf16.mxu0 0
    %1073 = vmatpush1.bf16.msra.mxu0 0
    %1074 = vmatprep.subr.bf16.mxu0 0
    %1075 = vmatpush1.bf16.msra.mxu0 0
    %1076 = vmatprep.subr.bf16.mxu0 0
    %1077 = vmatpush1.bf16.msra.mxu0 0
    %1078 = vmatprep.subr.bf16.mxu0 0
    %1079 = vmatpush1.bf16.msra.mxu0 0
    %1080 = vmatprep.subr.bf16.mxu0 0
    %1081 = vmatpush1.bf16.msra.mxu0 0
    %1082 = vmatprep.subr.bf16.mxu0 0
    %1083 = vmatpush1.bf16.msra.mxu0 0
    %1084 = vmatprep.mubr.bf16.mxu0 0
    %1085 = vmatmul.mubr.bf16.gmra.mrb[0].mxu0 %v1043
    %v1086 = vpop.f32.mrb[0].mxu0
    %v1087 = vadd.f32 %v1032, %v1086
    %v1088 = vpop.f32.mrb[0].mxu0
    %v1089 = vpop.f32.mrb[0].mxu0
    %v1090 = vadd.f32 %v1033, %v1089
    %v1091 = vpop.f32.mrb[0].mxu0
    %1092 = vmatprep.mubr.bf16.mxu0 0
    %1093 = vmatmul.mubr.bf16.gmra.mrb[0].mxu0 %v1046
    %v1094 = vpop.f32.mrb[0].mxu0
    %v1095 = vadd.f32 %v1034, %v1094
    %v1096 = vpop.f32.mrb[0].mxu0
    %v1097 = vpop.f32.mrb[0].mxu0
    %v1098 = vpop.f32.mrb[0].mxu0
    %1099 = vdwg.mxu0
    %v1100 = vld [vmem:[%s6 + $0x7] ss:$0 sm:$0xff]
    %v1101 = vadd.f32 %v1087, %v1100
    %v1102 = vadd.f32 %v1090, %v1100
    %v1103 = vadd.f32 %v1095, %v1100
    %v1104 = vmax.f32 %v1101, 0.0
    %v1105 = vmax.f32 %v1102, 0.0
    %v1106 = vmax.f32 %v1103, 0.0
    %v1107 = vld [vmem:[#allocation2 + $0x1e8] sm:$0xf]
    %v1108 = vld [vmem:[#allocation2 + $0x1ec] sm:$0xf]
    %v1109 = vld [vmem:[#allocation2 + $0x1f0] sm:$0xf]
    %v1110 = vld [vmem:[#allocation2 + $0x1f4] sm:$0xf]
    %v1111 = vld [vmem:[#allocation2 + $0x1f8] sm:$0xf]
    %v1112 = vld [vmem:[#allocation2 + $0x1fc] sm:$0xf]
    %v1113 = vld [vmem:[#allocation2 + $0x200] sm:$0xf]
    %v1114 = vld [vmem:[#allocation2 + $0x204] sm:$0xf]
    %v1115 = vpack.c.bf16 %v1105, %v1104
    %v1116 = vpack.c.bf16 %v1106, %v1106
    %v1117 = vld [vmem:[%s6 + $0x10] ss:$0 sm:$0xff]
    %v1126 = vunpack.c.l.b16 %v1107
    %v1127 = vunpack.c.l.b16 %v1108
    %v1128 = vunpack.c.l.b16 %v1109
    %v1129 = vunpack.c.l.b16 %v1110
    %v1130 = vunpack.c.l.b16 %v1111
    %v1131 = vunpack.c.l.b16 %v1112
    %v1132 = vunpack.c.l.b16 %v1113
    %v1133 = vunpack.c.l.b16 %v1114
    %v1134 = vpack.c.b16 %v1127, %v1126
    %v1135 = vpack.c.b16 %v1129, %v1128
    %v1136 = vpack.c.b16 %v1131, %v1130
    %v1137 = vpack.c.b16 %v1133, %v1132
    %vm1142 = vcmask 523264
    %v1144 = vsel %vm1142, %v1115, 0
    %v1147 = vsel %vm1142, %v1116, 0
    %1149 = vmatprep.subr.bf16.mxu0 0
    %1150 = vmatpush1.bf16.msra.mxu0 %v1134
    %1151 = vmatprep.subr.bf16.mxu0 0
    %1152 = vmatpush1.bf16.msra.mxu0 %v1135
    %1153 = vmatprep.subr.bf16.mxu0 0
    %1154 = vmatpush1.bf16.msra.mxu0 %v1136
    %1155 = vmatprep.subr.bf16.mxu0 0
    %1156 = vmatpush1.bf16.msra.mxu0 %v1137
    %1157 = vmatprep.subr.bf16.mxu0 0
    %1158 = vmatpush1.bf16.msra.mxu0 0
    %1159 = vmatprep.subr.bf16.mxu0 0
    %1160 = vmatpush1.bf16.msra.mxu0 0
    %1161 = vmatprep.subr.bf16.mxu0 0
    %1162 = vmatpush1.bf16.msra.mxu0 0
    %1163 = vmatprep.subr.bf16.mxu0 0
    %1164 = vmatpush1.bf16.msra.mxu0 0
    %1165 = vmatprep.subr.bf16.mxu0 0
    %1166 = vmatpush1.bf16.msra.mxu0 0
    %1167 = vmatprep.subr.bf16.mxu0 0
    %1168 = vmatpush1.bf16.msra.mxu0 0
    %1169 = vmatprep.subr.bf16.mxu0 0
    %1170 = vmatpush1.bf16.msra.mxu0 0
    %1171 = vmatprep.subr.bf16.mxu0 0
    %1172 = vmatpush1.bf16.msra.mxu0 0
    %1173 = vmatprep.subr.bf16.mxu0 0
    %1174 = vmatpush1.bf16.msra.mxu0 0
    %1175 = vmatprep.subr.bf16.mxu0 0
    %1176 = vmatpush1.bf16.msra.mxu0 0
    %1177 = vmatprep.subr.bf16.mxu0 0
    %1178 = vmatpush1.bf16.msra.mxu0 0
    %1179 = vmatprep.subr.bf16.mxu0 0
    %1180 = vmatpush1.bf16.msra.mxu0 0
    %1181 = vmatprep.mubr.bf16.mxu0 0
    %1182 = vmatmul.mubr.bf16.gmra.mrb[0].mxu0 %v1144
    %v1183 = vpop.f32.mrb[0].mxu0
    %v1184 = vadd.f32 %v1117, %v1183
    %v1185 = vpop.f32.mrb[0].mxu0
    %v1186 = vpop.f32.mrb[0].mxu0
    %v1187 = vadd.f32 %v1117, %v1186
    %v1188 = vpop.f32.mrb[0].mxu0
    %1189 = vmatprep.mubr.bf16.mxu0 0
    %1190 = vmatmul.mubr.bf16.gmra.mrb[0].mxu0 %v1147
    %v1191 = vpop.f32.mrb[0].mxu0
    %v1192 = vadd.f32 %v1117, %v1191
    %v1193 = vpop.f32.mrb[0].mxu0
    %v1194 = vpop.f32.mrb[0].mxu0
    %v1195 = vpop.f32.mrb[0].mxu0
    %1196 = vdwg.mxu0
    %v1197 = vlaneseq
    %v1198 = vand.u32 %v1197, 127
    %vm1199 = vcmp.eq.s32.totalorder %v1198, 0
    %v1200 = vmax.f32 %v1184, 0.0
    %v1201 = vmax.f32 %v1187, 0.0
    %v1202 = vmax.f32 %v1192, 0.0
    %v1203 = vsel %vm1199, %v1200, %v1184
    %v1204 = vsel %vm1199, %v1201, %v1187
    %v1205 = vsel %vm1199, %v1202, %v1192
    %v1206 = vld [vmem:[#allocation4 + $0x80] sm:$0xff]
    %v1207 = vld [vmem:[#allocation4 + $0x88] sm:$0xff]
    %v1208 = vld [vmem:[#allocation4 + $0x90] sm:$0xff]
    %v1209 = vld [vmem:[#allocation4 + $0x98] sm:$0xff]
    %v1210 = vld [vmem:[#allocation4 + $0xa0] sm:$0xff]
    %v1211 = vld [vmem:[#allocation4 + $0xa8] sm:$0xff]
    %v1212 = vld [vmem:[#allocation4 + $0xb0] sm:$0xff]
    %v1213 = vld [vmem:[#allocation4 + $0xb8] sm:$0xff]
    %v1214 = vld [vmem:[#allocation4 + $0xc0] sm:$0xff]
    %v1215 = vld [vmem:[#allocation4 + $0xc8] sm:$0xff]
    %v1216 = vld [vmem:[#allocation4 + $0xd0] sm:$0xff]
    %v1217 = vld [vmem:[#allocation4 + $0xd8] sm:$0xff]
    %v1218 = vld [vmem:[#allocation4 + $0xe0] sm:$0xff]
    %v1219 = vld [vmem:[#allocation4 + $0xe8] sm:$0xff]
    %v1220 = vld [vmem:[#allocation4 + $0xf0] sm:$0xff]
    %v1221 = vld [vmem:[#allocation4 + $0xf8] sm:$0xff]
    %v1222 = vld [vmem:[#allocation4 + $0x100] sm:$0xff]
    %v1223 = vld [vmem:[#allocation4 + $0x108] sm:$0xff]
    %v1224 = vld [vmem:[#allocation4 + $0x110] sm:$0xff]
    %v1225 = vld [vmem:[#allocation4 + $0x118] sm:$0xff]
    %v1226 = vld [vmem:[#allocation4 + $0x120] sm:$0xff]
    %v1227 = vld [vmem:[#allocation4 + $0x128] sm:$0xff]
    %v1228 = vld [vmem:[#allocation4 + $0x130] sm:$0xff]
    %v1229 = vld [vmem:[#allocation4 + $0x138] sm:$0xff]
    %v1230 = vld [vmem:[#allocation4 + $0x140] sm:$0xff]
    %v1231 = vld [vmem:[#allocation4 + $0x148] sm:$0xff]
    %v1232 = vld [vmem:[#allocation4 + $0x150] sm:$0xff]
    %v1233 = vld [vmem:[#allocation4 + $0x158] sm:$0xff]
    %v1234 = vld [vmem:[#allocation4 + $0x160] sm:$0xff]
    %v1235 = vld [vmem:[#allocation4 + $0x168] sm:$0xff]
    %v1236 = vld [vmem:[#allocation4 + $0x170] sm:$0xff]
    %v1237 = vld [vmem:[#allocation4 + $0x178] sm:$0xff]
    %s1238 = scalar_lea.vmem %s6, 5
    %v1239 = vld [vmem:[%s1238] ss:$8 sm:$0x3]
    %v1241 = vlaneseq
    %v1242 = vshrl.u32 %v1241, 7
    %v1243 = vsub.s32 0, %v1242
    %v1244 = vrot.slane %v1239, %v1243
    %v1245 = vlaneseq
    %v1246 = vshrl.u32 %v1245, 7
    %v1247 = vsub.s32 1, %v1246
    %v1248 = vrot.slane %v1239, %v1247
    %v1283 = vunpack.c.l.b16 %v1206
    %v1284 = vunpack.c.h.b16 %v1206
    %v1285 = vunpack.c.l.b16 %v1207
    %v1286 = vunpack.c.h.b16 %v1207
    %v1287 = vunpack.c.l.b16 %v1208
    %v1288 = vunpack.c.h.b16 %v1208
    %v1289 = vunpack.c.l.b16 %v1209
    %v1290 = vunpack.c.h.b16 %v1209
    %v1291 = vunpack.c.l.b16 %v1210
    %v1292 = vunpack.c.h.b16 %v1210
    %v1293 = vunpack.c.l.b16 %v1211
    %v1294 = vunpack.c.h.b16 %v1211
    %v1295 = vunpack.c.l.b16 %v1212
    %v1296 = vunpack.c.h.b16 %v1212
    %v1297 = vunpack.c.l.b16 %v1213
    %v1298 = vunpack.c.h.b16 %v1213
    %v1299 = vunpack.c.l.b16 %v1214
    %v1300 = vunpack.c.h.b16 %v1214
    %v1301 = vunpack.c.l.b16 %v1215
    %v1302 = vunpack.c.h.b16 %v1215
    %v1303 = vunpack.c.l.b16 %v1216
    %v1304 = vunpack.c.h.b16 %v1216
    %v1305 = vunpack.c.l.b16 %v1217
    %v1306 = vunpack.c.h.b16 %v1217
    %v1307 = vunpack.c.l.b16 %v1218
    %v1308 = vunpack.c.h.b16 %v1218
    %v1309 = vunpack.c.l.b16 %v1219
    %v1310 = vunpack.c.h.b16 %v1219
    %v1311 = vunpack.c.l.b16 %v1220
    %v1312 = vunpack.c.h.b16 %v1220
    %v1313 = vunpack.c.l.b16 %v1221
    %v1314 = vunpack.c.h.b16 %v1221
    %v1315 = vunpack.c.l.b16 %v1222
    %v1316 = vunpack.c.h.b16 %v1222
    %v1317 = vunpack.c.l.b16 %v1223
    %v1318 = vunpack.c.h.b16 %v1223
    %v1319 = vunpack.c.l.b16 %v1224
    %v1320 = vunpack.c.h.b16 %v1224
    %v1321 = vunpack.c.l.b16 %v1225
    %v1322 = vunpack.c.h.b16 %v1225
    %v1323 = vunpack.c.l.b16 %v1226
    %v1324 = vunpack.c.h.b16 %v1226
    %v1325 = vunpack.c.l.b16 %v1227
    %v1326 = vunpack.c.h.b16 %v1227
    %v1327 = vunpack.c.l.b16 %v1228
    %v1328 = vunpack.c.h.b16 %v1228
    %v1329 = vunpack.c.l.b16 %v1229
    %v1330 = vunpack.c.h.b16 %v1229
    %v1331 = vunpack.c.l.b16 %v1230
    %v1332 = vunpack.c.h.b16 %v1230
    %v1333 = vunpack.c.l.b16 %v1231
    %v1334 = vunpack.c.h.b16 %v1231
    %v1335 = vunpack.c.l.b16 %v1232
    %v1336 = vunpack.c.h.b16 %v1232
    %v1337 = vunpack.c.l.b16 %v1233
    %v1338 = vunpack.c.h.b16 %v1233
    %v1339 = vunpack.c.l.b16 %v1234
    %v1340 = vunpack.c.h.b16 %v1234
    %v1341 = vunpack.c.l.b16 %v1235
    %v1342 = vunpack.c.h.b16 %v1235
    %v1343 = vunpack.c.l.b16 %v1236
    %v1344 = vunpack.c.h.b16 %v1236
    %v1345 = vunpack.c.l.b16 %v1237
    %v1346 = vunpack.c.h.b16 %v1237
    %v1347 = vpack.c.b16 %v1285, %v1283
    %v1348 = vpack.c.b16 %v1286, %v1284
    %v1349 = vpack.c.b16 %v1289, %v1287
    %v1350 = vpack.c.b16 %v1290, %v1288
    %v1351 = vpack.c.b16 %v1293, %v1291
    %v1352 = vpack.c.b16 %v1294, %v1292
    %v1353 = vpack.c.b16 %v1297, %v1295
    %v1354 = vpack.c.b16 %v1298, %v1296
    %v1355 = vpack.c.b16 %v1301, %v1299
    %v1356 = vpack.c.b16 %v1302, %v1300
    %v1357 = vpack.c.b16 %v1305, %v1303
    %v1358 = vpack.c.b16 %v1306, %v1304
    %v1359 = vpack.c.b16 %v1309, %v1307
    %v1360 = vpack.c.b16 %v1310, %v1308
    %v1361 = vpack.c.b16 %v1313, %v1311
    %v1362 = vpack.c.b16 %v1314, %v1312
    %v1363 = vpack.c.b16 %v1317, %v1315
    %v1364 = vpack.c.b16 %v1318, %v1316
    %v1365 = vpack.c.b16 %v1321, %v1319
    %v1366 = vpack.c.b16 %v1322, %v1320
    %v1367 = vpack.c.b16 %v1325, %v1323
    %v1368 = vpack.c.b16 %v1326, %v1324
    %v1369 = vpack.c.b16 %v1329, %v1327
    %v1370 = vpack.c.b16 %v1330, %v1328
    %v1371 = vpack.c.b16 %v1333, %v1331
    %v1372 = vpack.c.b16 %v1334, %v1332
    %v1373 = vpack.c.b16 %v1337, %v1335
    %v1374 = vpack.c.b16 %v1338, %v1336
    %v1375 = vpack.c.b16 %v1341, %v1339
    %v1376 = vpack.c.b16 %v1342, %v1340
    %v1377 = vpack.c.b16 %v1345, %v1343
    %v1378 = vpack.c.b16 %v1346, %v1344
    %1411 = vmatprep.subr.bf16.mxu0 %v1348
    %1412 = vmatpush1.bf16.msra.mxu0 %v1347
    %1413 = vmatprep.subr.bf16.mxu0 %v1350
    %1414 = vmatpush1.bf16.msra.mxu0 %v1349
    %1415 = vmatprep.subr.bf16.mxu0 %v1352
    %1416 = vmatpush1.bf16.msra.mxu0 %v1351
    %1417 = vmatprep.subr.bf16.mxu0 %v1354
    %1418 = vmatpush1.bf16.msra.mxu0 %v1353
    %1419 = vmatprep.subr.bf16.mxu0 %v1356
    %1420 = vmatpush1.bf16.msra.mxu0 %v1355
    %1421 = vmatprep.subr.bf16.mxu0 %v1358
    %1422 = vmatpush1.bf16.msra.mxu0 %v1357
    %1423 = vmatprep.subr.bf16.mxu0 %v1360
    %1424 = vmatpush1.bf16.msra.mxu0 %v1359
    %1425 = vmatprep.subr.bf16.mxu0 %v1362
    %1426 = vmatpush1.bf16.msra.mxu0 %v1361
    %1427 = vmatprep.subr.bf16.mxu0 %v1364
    %1428 = vmatpush1.bf16.msra.mxu0 %v1363
    %1429 = vmatprep.subr.bf16.mxu0 %v1366
    %1430 = vmatpush1.bf16.msra.mxu0 %v1365
    %1431 = vmatprep.subr.bf16.mxu0 %v1368
    %1432 = vmatpush1.bf16.msra.mxu0 %v1367
    %1433 = vmatprep.subr.bf16.mxu0 %v1370
    %1434 = vmatpush1.bf16.msra.mxu0 %v1369
    %1435 = vmatprep.subr.bf16.mxu0 %v1372
    %1436 = vmatpush1.bf16.msra.mxu0 %v1371
    %1437 = vmatprep.subr.bf16.mxu0 %v1374
    %1438 = vmatpush1.bf16.msra.mxu0 %v1373
    %1439 = vmatprep.subr.bf16.mxu0 %v1376
    %1440 = vmatpush1.bf16.msra.mxu0 %v1375
    %1441 = vmatprep.subr.bf16.mxu0 %v1378
    %1442 = vmatpush1.bf16.msra.mxu0 %v1377
    %1443 = vmatprep.mubr.bf16.mxu0 %v880
    %1444 = vmatmul.mubr.bf16.gmra.mrb[0].mxu0 %v879
    %v1445 = vpop.f32.mrb[0].mxu0
    %v1446 = vadd.f32 %v1244, %v1445
    %v1447 = vpop.f32.mrb[0].mxu0
    %v1448 = vadd.f32 %v1248, %v1447
    %v1449 = vpop.f32.mrb[0].mxu0
    %v1450 = vpop.f32.mrb[0].mxu0
    %1451 = vdwg.mxu0
    %v1452 = vmax.f32 %v1446, 0.0
    %v1453 = vmax.f32 %v1448, 0.0
    %v1454 = vld [vmem:[#allocation4 + $0x180] sm:$0xff]
    %v1455 = vld [vmem:[#allocation4 + $0x188] sm:$0xff]
    %v1456 = vld [vmem:[#allocation4 + $0x190] sm:$0xff]
    %v1457 = vld [vmem:[#allocation4 + $0x198] sm:$0xff]
    %v1458 = vld [vmem:[#allocation4 + $0x1a0] sm:$0xff]
    %v1459 = vld [vmem:[#allocation4 + $0x1a8] sm:$0xff]
    %v1460 = vld [vmem:[#allocation4 + $0x1b0] sm:$0xff]
    %v1461 = vld [vmem:[#allocation4 + $0x1b8] sm:$0xff]
    %v1462 = vld [vmem:[#allocation4 + $0x1c0] sm:$0xff]
    %v1463 = vld [vmem:[#allocation4 + $0x1c8] sm:$0xff]
    %v1464 = vld [vmem:[#allocation4 + $0x1d0] sm:$0xff]
    %v1465 = vld [vmem:[#allocation4 + $0x1d8] sm:$0xff]
    %v1466 = vld [vmem:[#allocation4 + $0x1e0] sm:$0xff]
    %v1467 = vld [vmem:[#allocation4 + $0x1e8] sm:$0xff]
    %v1468 = vld [vmem:[#allocation4 + $0x1f0] sm:$0xff]
    %v1469 = vld [vmem:[#allocation4 + $0x1f8] sm:$0xff]
    %v1470 = vld [vmem:[#allocation4 + $0x200] sm:$0xff]
    %v1471 = vld [vmem:[#allocation4 + $0x208] sm:$0xff]
    %v1472 = vld [vmem:[#allocation4 + $0x210] sm:$0xff]
    %v1473 = vld [vmem:[#allocation4 + $0x218] sm:$0xff]
    %v1474 = vld [vmem:[#allocation4 + $0x220] sm:$0xff]
    %v1475 = vld [vmem:[#allocation4 + $0x228] sm:$0xff]
    %v1476 = vld [vmem:[#allocation4 + $0x230] sm:$0xff]
    %v1477 = vld [vmem:[#allocation4 + $0x238] sm:$0xff]
    %v1478 = vld [vmem:[#allocation4 + $0x240] sm:$0xff]
    %v1479 = vld [vmem:[#allocation4 + $0x248] sm:$0xff]
    %v1480 = vld [vmem:[#allocation4 + $0x250] sm:$0xff]
    %v1481 = vld [vmem:[#allocation4 + $0x258] sm:$0xff]
    %v1482 = vld [vmem:[#allocation4 + $0x260] sm:$0xff]
    %v1483 = vld [vmem:[#allocation4 + $0x268] sm:$0xff]
    %v1484 = vld [vmem:[#allocation4 + $0x270] sm:$0xff]
    %v1485 = vld [vmem:[#allocation4 + $0x278] sm:$0xff]
    %v1486 = vpack.c.bf16 %v1452, %v1452
    %v1487 = vpack.c.bf16 %v1453, %v1453
    %s1488 = scalar_lea.vmem %s6, 6
    %v1489 = vld [vmem:[%s1488] ss:$8 sm:$0x3]
    %v1491 = vlaneseq
    %v1492 = vshrl.u32 %v1491, 7
    %v1493 = vsub.s32 0, %v1492
    %v1494 = vrot.slane %v1489, %v1493
    %v1495 = vlaneseq
    %v1496 = vshrl.u32 %v1495, 7
    %v1497 = vsub.s32 1, %v1496
    %v1498 = vrot.slane %v1489, %v1497
    %v1533 = vunpack.c.l.b16 %v1454
    %v1534 = vunpack.c.h.b16 %v1454
    %v1535 = vunpack.c.l.b16 %v1455
    %v1536 = vunpack.c.h.b16 %v1455
    %v1537 = vunpack.c.l.b16 %v1456
    %v1538 = vunpack.c.h.b16 %v1456
    %v1539 = vunpack.c.l.b16 %v1457
    %v1540 = vunpack.c.h.b16 %v1457
    %v1541 = vunpack.c.l.b16 %v1458
    %v1542 = vunpack.c.h.b16 %v1458
    %v1543 = vunpack.c.l.b16 %v1459
    %v1544 = vunpack.c.h.b16 %v1459
    %v1545 = vunpack.c.l.b16 %v1460
    %v1546 = vunpack.c.h.b16 %v1460
    %v1547 = vunpack.c.l.b16 %v1461
    %v1548 = vunpack.c.h.b16 %v1461
    %v1549 = vunpack.c.l.b16 %v1462
    %v1550 = vunpack.c.h.b16 %v1462
    %v1551 = vunpack.c.l.b16 %v1463
    %v1552 = vunpack.c.h.b16 %v1463
    %v1553 = vunpack.c.l.b16 %v1464
    %v1554 = vunpack.c.h.b16 %v1464
    %v1555 = vunpack.c.l.b16 %v1465
    %v1556 = vunpack.c.h.b16 %v1465
    %v1557 = vunpack.c.l.b16 %v1466
    %v1558 = vunpack.c.h.b16 %v1466
    %v1559 = vunpack.c.l.b16 %v1467
    %v1560 = vunpack.c.h.b16 %v1467
    %v1561 = vunpack.c.l.b16 %v1468
    %v1562 = vunpack.c.h.b16 %v1468
    %v1563 = vunpack.c.l.b16 %v1469
    %v1564 = vunpack.c.h.b16 %v1469
    %v1565 = vunpack.c.l.b16 %v1470
    %v1566 = vunpack.c.h.b16 %v1470
    %v1567 = vunpack.c.l.b16 %v1471
    %v1568 = vunpack.c.h.b16 %v1471
    %v1569 = vunpack.c.l.b16 %v1472
    %v1570 = vunpack.c.h.b16 %v1472
    %v1571 = vunpack.c.l.b16 %v1473
    %v1572 = vunpack.c.h.b16 %v1473
    %v1573 = vunpack.c.l.b16 %v1474
    %v1574 = vunpack.c.h.b16 %v1474
    %v1575 = vunpack.c.l.b16 %v1475
    %v1576 = vunpack.c.h.b16 %v1475
    %v1577 = vunpack.c.l.b16 %v1476
    %v1578 = vunpack.c.h.b16 %v1476
    %v1579 = vunpack.c.l.b16 %v1477
    %v1580 = vunpack.c.h.b16 %v1477
    %v1581 = vunpack.c.l.b16 %v1478
    %v1582 = vunpack.c.h.b16 %v1478
    %v1583 = vunpack.c.l.b16 %v1479
    %v1584 = vunpack.c.h.b16 %v1479
    %v1585 = vunpack.c.l.b16 %v1480
    %v1586 = vunpack.c.h.b16 %v1480
    %v1587 = vunpack.c.l.b16 %v1481
    %v1588 = vunpack.c.h.b16 %v1481
    %v1589 = vunpack.c.l.b16 %v1482
    %v1590 = vunpack.c.h.b16 %v1482
    %v1591 = vunpack.c.l.b16 %v1483
    %v1592 = vunpack.c.h.b16 %v1483
    %v1593 = vunpack.c.l.b16 %v1484
    %v1594 = vunpack.c.h.b16 %v1484
    %v1595 = vunpack.c.l.b16 %v1485
    %v1596 = vunpack.c.h.b16 %v1485
    %v1597 = vpack.c.b16 %v1535, %v1533
    %v1598 = vpack.c.b16 %v1536, %v1534
    %v1599 = vpack.c.b16 %v1539, %v1537
    %v1600 = vpack.c.b16 %v1540, %v1538
    %v1601 = vpack.c.b16 %v1543, %v1541
    %v1602 = vpack.c.b16 %v1544, %v1542
    %v1603 = vpack.c.b16 %v1547, %v1545
    %v1604 = vpack.c.b16 %v1548, %v1546
    %v1605 = vpack.c.b16 %v1551, %v1549
    %v1606 = vpack.c.b16 %v1552, %v1550
    %v1607 = vpack.c.b16 %v1555, %v1553
    %v1608 = vpack.c.b16 %v1556, %v1554
    %v1609 = vpack.c.b16 %v1559, %v1557
    %v1610 = vpack.c.b16 %v1560, %v1558
    %v1611 = vpack.c.b16 %v1563, %v1561
    %v1612 = vpack.c.b16 %v1564, %v1562
    %v1613 = vpack.c.b16 %v1567, %v1565
    %v1614 = vpack.c.b16 %v1568, %v1566
    %v1615 = vpack.c.b16 %v1571, %v1569
    %v1616 = vpack.c.b16 %v1572, %v1570
    %v1617 = vpack.c.b16 %v1575, %v1573
    %v1618 = vpack.c.b16 %v1576, %v1574
    %v1619 = vpack.c.b16 %v1579, %v1577
    %v1620 = vpack.c.b16 %v1580, %v1578
    %v1621 = vpack.c.b16 %v1583, %v1581
    %v1622 = vpack.c.b16 %v1584, %v1582
    %v1623 = vpack.c.b16 %v1587, %v1585
    %v1624 = vpack.c.b16 %v1588, %v1586
    %v1625 = vpack.c.b16 %v1591, %v1589
    %v1626 = vpack.c.b16 %v1592, %v1590
    %v1627 = vpack.c.b16 %v1595, %v1593
    %v1628 = vpack.c.b16 %v1596, %v1594
    %1661 = vmatprep.subr.bf16.mxu0 %v1598
    %1662 = vmatpush1.bf16.msra.mxu0 %v1597
    %1663 = vmatprep.subr.bf16.mxu0 %v1600
    %1664 = vmatpush1.bf16.msra.mxu0 %v1599
    %1665 = vmatprep.subr.bf16.mxu0 %v1602
    %1666 = vmatpush1.bf16.msra.mxu0 %v1601
    %1667 = vmatprep.subr.bf16.mxu0 %v1604
    %1668 = vmatpush1.bf16.msra.mxu0 %v1603
    %1669 = vmatprep.subr.bf16.mxu0 %v1606
    %1670 = vmatpush1.bf16.msra.mxu0 %v1605
    %1671 = vmatprep.subr.bf16.mxu0 %v1608
    %1672 = vmatpush1.bf16.msra.mxu0 %v1607
    %1673 = vmatprep.subr.bf16.mxu0 %v1610
    %1674 = vmatpush1.bf16.msra.mxu0 %v1609
    %1675 = vmatprep.subr.bf16.mxu0 %v1612
    %1676 = vmatpush1.bf16.msra.mxu0 %v1611
    %1677 = vmatprep.subr.bf16.mxu0 %v1614
    %1678 = vmatpush1.bf16.msra.mxu0 %v1613
    %1679 = vmatprep.subr.bf16.mxu0 %v1616
    %1680 = vmatpush1.bf16.msra.mxu0 %v1615
    %1681 = vmatprep.subr.bf16.mxu0 %v1618
    %1682 = vmatpush1.bf16.msra.mxu0 %v1617
    %1683 = vmatprep.subr.bf16.mxu0 %v1620
    %1684 = vmatpush1.bf16.msra.mxu0 %v1619
    %1685 = vmatprep.subr.bf16.mxu0 %v1622
    %1686 = vmatpush1.bf16.msra.mxu0 %v1621
    %1687 = vmatprep.subr.bf16.mxu0 %v1624
    %1688 = vmatpush1.bf16.msra.mxu0 %v1623
    %1689 = vmatprep.subr.bf16.mxu0 %v1626
    %1690 = vmatpush1.bf16.msra.mxu0 %v1625
    %1691 = vmatprep.subr.bf16.mxu0 %v1628
    %1692 = vmatpush1.bf16.msra.mxu0 %v1627
    %1693 = vmatprep.mubr.bf16.mxu0 %v1487
    %1694 = vmatmul.mubr.bf16.gmra.mrb[0].mxu0 %v1486
    %v1695 = vpop.f32.mrb[0].mxu0
    %v1696 = vadd.f32 %v1494, %v1695
    %v1697 = vpop.f32.mrb[0].mxu0
    %v1698 = vadd.f32 %v1498, %v1697
    %v1699 = vpop.f32.mrb[0].mxu0
    %v1700 = vpop.f32.mrb[0].mxu0
    %1701 = vdwg.mxu0
    %v1702 = vld [vmem:[#allocation2 + $0x208] sm:$0xf]
    %v1703 = vld [vmem:[#allocation2 + $0x20c] sm:$0xf]
    %v1704 = vld [vmem:[#allocation2 + $0x210] sm:$0xf]
    %v1705 = vld [vmem:[#allocation2 + $0x214] sm:$0xf]
    %v1706 = vld [vmem:[#allocation2 + $0x218] sm:$0xf]
    %v1707 = vld [vmem:[#allocation2 + $0x21c] sm:$0xf]
    %v1708 = vld [vmem:[#allocation2 + $0x220] sm:$0xf]
    %v1709 = vld [vmem:[#allocation2 + $0x224] sm:$0xf]
    %v1710 = vld [vmem:[#allocation2 + $0x228] sm:$0xf]
    %v1711 = vld [vmem:[#allocation2 + $0x22c] sm:$0xf]
    %v1712 = vld [vmem:[#allocation2 + $0x230] sm:$0xf]
    %v1713 = vld [vmem:[#allocation2 + $0x234] sm:$0xf]
    %v1714 = vld [vmem:[#allocation2 + $0x238] sm:$0xf]
    %v1715 = vld [vmem:[#allocation2 + $0x23c] sm:$0xf]
    %v1716 = vld [vmem:[#allocation2 + $0x240] sm:$0xf]
    %v1717 = vld [vmem:[#allocation2 + $0x244] sm:$0xf]
    %v1718 = vld [vmem:[#allocation2 + $0x248] sm:$0xf]
    %v1719 = vld [vmem:[#allocation2 + $0x24c] sm:$0xf]
    %v1720 = vld [vmem:[#allocation2 + $0x250] sm:$0xf]
    %v1721 = vld [vmem:[#allocation2 + $0x254] sm:$0xf]
    %v1722 = vld [vmem:[#allocation2 + $0x258] sm:$0xf]
    %v1723 = vld [vmem:[#allocation2 + $0x25c] sm:$0xf]
    %v1724 = vld [vmem:[#allocation2 + $0x260] sm:$0xf]
    %v1725 = vld [vmem:[#allocation2 + $0x264] sm:$0xf]
    %v1726 = vld [vmem:[#allocation2 + $0x268] sm:$0xf]
    %v1727 = vld [vmem:[#allocation2 + $0x26c] sm:$0xf]
    %v1728 = vld [vmem:[#allocation2 + $0x270] sm:$0xf]
    %v1729 = vld [vmem:[#allocation2 + $0x274] sm:$0xf]
    %v1730 = vld [vmem:[#allocation2 + $0x278] sm:$0xf]
    %v1731 = vld [vmem:[#allocation2 + $0x27c] sm:$0xf]
    %v1732 = vld [vmem:[#allocation2 + $0x280] sm:$0xf]
    %v1733 = vld [vmem:[#allocation2 + $0x284] sm:$0xf]
    %v1734 = vpack.c.bf16 %v1696, %v1696
    %v1735 = vpack.c.bf16 %v1698, %v1698
    %v1736 = vld [vmem:[%s3] sm:$0x3]
    %v1737 = vld [vmem:[#allocation2 + $0x288] sm:$0xf]
    %v1738 = vld [vmem:[#allocation2 + $0x28c] sm:$0x3]
    %v1739 = vpack.c.bf16 %v1736, %v1736
    %v1742 = vunpack.c.l.b16 %v1737
    %v1743 = vunpack.c.l.b16 %v1738
    %v1744 = vpack.c.b16 %v1743, %v1742
    %vm1745 = vcmask 97280
    %v1747 = vsel %vm1745, %v1739, 0
    %vm1749 = vcmask 1045504
    %v1751 = vsel %vm1749, %v1744, 0
    %1753 = vmatprep.subr.bf16.mxu0 0
    %1754 = vmatpush1.bf16.msra.mxu0 %v1751
    %1755 = vmatprep.subr.bf16.mxu0 0
    %1756 = vmatpush1.bf16.msra.mxu0 0
    %1757 = vmatprep.subr.bf16.mxu0 0
    %1758 = vmatpush1.bf16.msra.mxu0 0
    %1759 = vmatprep.subr.bf16.mxu0 0
    %1760 = vmatpush1.bf16.msra.mxu0 0
    %1761 = vmatprep.subr.bf16.mxu0 0
    %1762 = vmatpush1.bf16.msra.mxu0 0
    %1763 = vmatprep.subr.bf16.mxu0 0
    %1764 = vmatpush1.bf16.msra.mxu0 0
    %1765 = vmatprep.subr.bf16.mxu0 0
    %1766 = vmatpush1.bf16.msra.mxu0 0
    %1767 = vmatprep.subr.bf16.mxu0 0
    %1768 = vmatpush1.bf16.msra.mxu0 0
    %1769 = vmatprep.subr.bf16.mxu0 0
    %1770 = vmatpush1.bf16.msra.mxu0 0
    %1771 = vmatprep.subr.bf16.mxu0 0
    %1772 = vmatpush1.bf16.msra.mxu0 0
    %1773 = vmatprep.subr.bf16.mxu0 0
    %1774 = vmatpush1.bf16.msra.mxu0 0
    %1775 = vmatprep.subr.bf16.mxu0 0
    %1776 = vmatpush1.bf16.msra.mxu0 0
    %1777 = vmatprep.subr.bf16.mxu0 0
    %1778 = vmatpush1.bf16.msra.mxu0 0
    %1779 = vmatprep.subr.bf16.mxu0 0
    %1780 = vmatpush1.bf16.msra.mxu0 0
    %1781 = vmatprep.subr.bf16.mxu0 0
    %1782 = vmatpush1.bf16.msra.mxu0 0
    %1783 = vmatprep.subr.bf16.mxu0 0
    %1784 = vmatpush1.bf16.msra.mxu0 0
    %1785 = vmatprep.mubr.bf16.mxu0 0
    %1786 = vmatmul.mubr.bf16.gmra.mrb[0].mxu0 %v1747
    %v1787 = vpop.f32.mrb[0].mxu0
    %v1788 = vadd.f32 0.0, %v1787
    %v1789 = vpop.f32.mrb[0].mxu0
    %v1790 = vpop.f32.mrb[0].mxu0
    %v1791 = vpop.f32.mrb[0].mxu0
    %1792 = vdwg.mxu0
    %v1825 = vunpack.c.l.b16 %v1702
    %v1826 = vunpack.c.l.b16 %v1703
    %v1827 = vunpack.c.l.b16 %v1704
    %v1828 = vunpack.c.l.b16 %v1705
    %v1829 = vunpack.c.l.b16 %v1706
    %v1830 = vunpack.c.l.b16 %v1707
    %v1831 = vunpack.c.l.b16 %v1708
    %v1832 = vunpack.c.l.b16 %v1709
    %v1833 = vunpack.c.l.b16 %v1710
    %v1834 = vunpack.c.l.b16 %v1711
    %v1835 = vunpack.c.l.b16 %v1712
    %v1836 = vunpack.c.l.b16 %v1713
    %v1837 = vunpack.c.l.b16 %v1714
    %v1838 = vunpack.c.l.b16 %v1715
    %v1839 = vunpack.c.l.b16 %v1716
    %v1840 = vunpack.c.l.b16 %v1717
    %v1841 = vunpack.c.l.b16 %v1718
    %v1842 = vunpack.c.l.b16 %v1719
    %v1843 = vunpack.c.l.b16 %v1720
    %v1844 = vunpack.c.l.b16 %v1721
    %v1845 = vunpack.c.l.b16 %v1722
    %v1846 = vunpack.c.l.b16 %v1723
    %v1847 = vunpack.c.l.b16 %v1724
    %v1848 = vunpack.c.l.b16 %v1725
    %v1849 = vunpack.c.l.b16 %v1726
    %v1850 = vunpack.c.l.b16 %v1727
    %v1851 = vunpack.c.l.b16 %v1728
    %v1852 = vunpack.c.l.b16 %v1729
    %v1853 = vunpack.c.l.b16 %v1730
    %v1854 = vunpack.c.l.b16 %v1731
    %v1855 = vunpack.c.l.b16 %v1732
    %v1856 = vunpack.c.l.b16 %v1733
    %v1857 = vpack.c.b16 %v1826, %v1825
    %v1858 = vpack.c.b16 %v1828, %v1827
    %v1859 = vpack.c.b16 %v1830, %v1829
    %v1860 = vpack.c.b16 %v1832, %v1831
    %v1861 = vpack.c.b16 %v1834, %v1833
    %v1862 = vpack.c.b16 %v1836, %v1835
    %v1863 = vpack.c.b16 %v1838, %v1837
    %v1864 = vpack.c.b16 %v1840, %v1839
    %v1865 = vpack.c.b16 %v1842, %v1841
    %v1866 = vpack.c.b16 %v1844, %v1843
    %v1867 = vpack.c.b16 %v1846, %v1845
    %v1868 = vpack.c.b16 %v1848, %v1847
    %v1869 = vpack.c.b16 %v1850, %v1849
    %v1870 = vpack.c.b16 %v1852, %v1851
    %v1871 = vpack.c.b16 %v1854, %v1853
    %v1872 = vpack.c.b16 %v1856, %v1855
    %1889 = vmatprep.subr.bf16.mxu0 0
    %1890 = vmatpush1.bf16.msra.mxu0 %v1857
    %1891 = vmatprep.subr.bf16.mxu0 0
    %1892 = vmatpush1.bf16.msra.mxu0 %v1858
    %1893 = vmatprep.subr.bf16.mxu0 0
    %1894 = vmatpush1.bf16.msra.mxu0 %v1859
    %1895 = vmatprep.subr.bf16.mxu0 0
    %1896 = vmatpush1.bf16.msra.mxu0 %v1860
    %1897 = vmatprep.subr.bf16.mxu0 0
    %1898 = vmatpush1.bf16.msra.mxu0 %v1861
    %1899 = vmatprep.subr.bf16.mxu0 0
    %1900 = vmatpush1.bf16.msra.mxu0 %v1862
    %1901 = vmatprep.subr.bf16.mxu0 0
    %1902 = vmatpush1.bf16.msra.mxu0 %v1863
    %1903 = vmatprep.subr.bf16.mxu0 0
    %1904 = vmatpush1.bf16.msra.mxu0 %v1864
    %1905 = vmatprep.subr.bf16.mxu0 0
    %1906 = vmatpush1.bf16.msra.mxu0 %v1865
    %1907 = vmatprep.subr.bf16.mxu0 0
    %1908 = vmatpush1.bf16.msra.mxu0 %v1866
    %1909 = vmatprep.subr.bf16.mxu0 0
    %1910 = vmatpush1.bf16.msra.mxu0 %v1867
    %1911 = vmatprep.subr.bf16.mxu0 0
    %1912 = vmatpush1.bf16.msra.mxu0 %v1868
    %1913 = vmatprep.subr.bf16.mxu0 0
    %1914 = vmatpush1.bf16.msra.mxu0 %v1869
    %1915 = vmatprep.subr.bf16.mxu0 0
    %1916 = vmatpush1.bf16.msra.mxu0 %v1870
    %1917 = vmatprep.subr.bf16.mxu0 0
    %1918 = vmatpush1.bf16.msra.mxu0 %v1871
    %1919 = vmatprep.subr.bf16.mxu0 0
    %1920 = vmatpush1.bf16.msra.mxu0 %v1872
    %1921 = vmatprep.mubr.bf16.mxu0 %v1735
    %1922 = vmatmul.mubr.bf16.gmra.mrb[0].mxu0 %v1734
    %v1923 = vpop.f32.mrb[0].mxu0
    %v1924 = vadd.f32 %v1788, %v1923
    %v1925 = vpop.f32.mrb[0].mxu0
    %v1926 = vpop.f32.mrb[0].mxu0
    %v1927 = vpop.f32.mrb[0].mxu0
    %1928 = vdwg.mxu0
    %v1929 = vld [vmem:[%s6 + $0x11] ss:$0 sm:$0xff]
    %v1930 = vadd.f32 %v1924, %v1929
    %v1931 = vmax.f32 %v1930, 0.0
    %v1932 = vld [vmem:[#allocation2 + $0x290] sm:$0xf]
    %v1933 = vld [vmem:[#allocation2 + $0x294] sm:$0xf]
    %v1934 = vld [vmem:[#allocation2 + $0x298] sm:$0xf]
    %v1935 = vld [vmem:[#allocation2 + $0x29c] sm:$0xf]
    %v1936 = vpack.c.bf16 %v1931, %v1931
    %v1937 = vld [vmem:[%s6 + $0x12] ss:$0 sm:$0xff]
    %v1942 = vunpack.c.l.b16 %v1932
    %v1943 = vunpack.c.l.b16 %v1933
    %v1944 = vunpack.c.l.b16 %v1934
    %v1945 = vunpack.c.l.b16 %v1935
    %v1946 = vpack.c.b16 %v1943, %v1942
    %v1947 = vpack.c.b16 %v1945, %v1944
    %v1951 = vsel %vm545, %v1936, 0
    %1953 = vmatprep.subr.bf16.mxu0 0
    %1954 = vmatpush1.bf16.msra.mxu0 %v1946
    %1955 = vmatprep.subr.bf16.mxu0 0
    %1956 = vmatpush1.bf16.msra.mxu0 %v1947
    %1957 = vmatprep.subr.bf16.mxu0 0
    %1958 = vmatpush1.bf16.msra.mxu0 0
    %1959 = vmatprep.subr.bf16.mxu0 0
    %1960 = vmatpush1.bf16.msra.mxu0 0
    %1961 = vmatprep.subr.bf16.mxu0 0
    %1962 = vmatpush1.bf16.msra.mxu0 0
    %1963 = vmatprep.subr.bf16.mxu0 0
    %1964 = vmatpush1.bf16.msra.mxu0 0
    %1965 = vmatprep.subr.bf16.mxu0 0
    %1966 = vmatpush1.bf16.msra.mxu0 0
    %1967 = vmatprep.subr.bf16.mxu0 0
    %1968 = vmatpush1.bf16.msra.mxu0 0
    %1969 = vmatprep.subr.bf16.mxu0 0
    %1970 = vmatpush1.bf16.msra.mxu0 0
    %1971 = vmatprep.subr.bf16.mxu0 0
    %1972 = vmatpush1.bf16.msra.mxu0 0
    %1973 = vmatprep.subr.bf16.mxu0 0
    %1974 = vmatpush1.bf16.msra.mxu0 0
    %1975 = vmatprep.subr.bf16.mxu0 0
    %1976 = vmatpush1.bf16.msra.mxu0 0
    %1977 = vmatprep.subr.bf16.mxu0 0
    %1978 = vmatpush1.bf16.msra.mxu0 0
    %1979 = vmatprep.subr.bf16.mxu0 0
    %1980 = vmatpush1.bf16.msra.mxu0 0
    %1981 = vmatprep.subr.bf16.mxu0 0
    %1982 = vmatpush1.bf16.msra.mxu0 0
    %1983 = vmatprep.subr.bf16.mxu0 0
    %1984 = vmatpush1.bf16.msra.mxu0 0
    %1985 = vmatprep.mubr.bf16.mxu0 0
    %1986 = vmatmul.mubr.bf16.gmra.mrb[0].mxu0 %v1951
    %v1987 = vpop.f32.mrb[0].mxu0
    %v1988 = vadd.f32 %v1937, %v1987
    %v1989 = vpop.f32.mrb[0].mxu0
    %v1990 = vpop.f32.mrb[0].mxu0
    %v1991 = vpop.f32.mrb[0].mxu0
    %1992 = vdwg.mxu0
    %v1993 = vxor.u32 %v1988, 2147483648
    %v1994 = vmul.f32 %v1993, 1.442695
    %v1995 = vpow.pop %v1994
    %v1996 = vadd.f32 %v1995, 1.0
    %v1997 = vrcp.pop %v1996
    %v1998 = vmul.f32 1.0, %v1997
    %vm1999 = vcmask 23552
    %2000 = vst.msk [vmem:[%s7] sm:$0xff] %vm1999, %v1203
    %2001 = vst.msk [vmem:[%s7 + $0x8] sm:$0xff] %vm1999, %v1204
    %vm2002 = vcmask 19456
    %2003 = vst.msk [vmem:[%s7 + $0x10] sm:$0xf] %vm2002, %v1205
    %2005 = vset.pattern.permute.xlu0 0
    %2006 = vperm.xlu0 %2005, %v1998
    %v2007 = vpop.permute.xlu0 %2006
    %vm2009 = vcmask 17408
    %2010 = vst.msk [vmem:[%s7 + $0x14] sm:$0x3] %vm2009, %v2007
    // Predicated region
    $region38: #{tpu_custom_call.1} parent=1 // pred_check
      _
    $region39: #{tpu_custom_call.1} parent=1 // pred_check_branch
      %2012 = sbr.rel (0) target = $region41
    $region40: #{tpu_custom_call.1} parent=1 // pred_region
      _
    $region41: #{tpu_custom_call.1} parent=1 // pred_fallthru
      _
    // Predicated region
    $region42: #{tpu_custom_call.1} parent=1 // pred_check
      _
    $region43: #{tpu_custom_call.1} parent=1 // pred_check_branch
      %2014 = sbr.rel (0) target = $region45
    $region44: #{tpu_custom_call.1} parent=1 // pred_region
      _
    $region45: #{tpu_custom_call.1} parent=1 // pred_fallthru
      _
    %2015 = vsyncpa [#allocation3], 1
    %2016 = vsyncpa [#allocation5], 1

</llo_original>
